<compile_context>
chip_gen: v5e
topology: v5e:2x2
jax: 0.10.0
libtpu: 0.0.40
codegen_flags: <defaults>
</compile_context>

<pallas_src>
import functools

import jax
import jax.numpy as jnp
from jax.experimental import pallas as pl
from jax.experimental.pallas import tpu as pltpu


def qnet_kernel(x_ref, w1_ref, b1_ref, w2_ref, b2_ref, w3_ref, b3_ref,
                wq_ref, bq_ref, o_ref):
    # fc1 + tanh  (bf16 MXU inputs, f32 accumulate, f32 bias/tanh)
    h = jnp.dot(x_ref[...], w1_ref[...], preferred_element_type=jnp.float32)
    h = jnp.tanh(h + b1_ref[...])
    # fc2 + tanh
    h = jnp.dot(h.astype(jnp.bfloat16), w2_ref[...],
                preferred_element_type=jnp.float32)
    h = jnp.tanh(h + b2_ref[...])
    # fc3 + tanh
    h = jnp.dot(h.astype(jnp.bfloat16), w3_ref[...],
                preferred_element_type=jnp.float32)
    h = jnp.tanh(h + b3_ref[...])
    # q (final linear, no activation); store in f32
    q = jnp.dot(h.astype(jnp.bfloat16), wq_ref[...],
                preferred_element_type=jnp.float32)
    o_ref[...] = (q + bq_ref[...]).astype(o_ref.dtype)


def _round_up(n, m):
    return ((n + m - 1) // m) * m


@functools.partial(jax.jit, static_argnames=("block_b",))
def qnet_forward(x, w1, b1, w2, b2, w3, b3, wq, bq, *, block_b=512):
    batch, state_dim = x.shape
    hidden_dim = w1.shape[1]
    action_dim = wq.shape[1]

    # Batch tiling: 512-row tiles (or the whole batch rounded to a sublane
    # multiple if it is smaller).  Non-multiple batches are zero-padded
    # wrapper-side and sliced back after the call — never a single giant
    # block, so the steady-state tiled path is kept on all generations.
    tb = min(block_b, _round_up(batch, 8))
    padded_batch = _round_up(batch, tb)
    if padded_batch != batch:
        x = jnp.pad(x, ((0, padded_batch - batch), (0, 0)))
    grid = (padded_batch // tb,)

    # bf16 MXU inputs; biases stay f32 (added to the f32 accumulator).
    x_bf16 = x.astype(jnp.bfloat16)
    w1b = w1.astype(jnp.bfloat16)
    w2b = w2.astype(jnp.bfloat16)
    w3b = w3.astype(jnp.bfloat16)
    wqb = wq.astype(jnp.bfloat16)

    # Weights/biases: index_map always returns block (0, 0) -> VMEM-resident,
    # DMA'd once while activation tiles pipeline over the batch grid.
    def resident(shape):
        return pl.BlockSpec(shape, lambda i: (0, 0))

    flops = 2 * batch * (state_dim * hidden_dim
                         + hidden_dim * hidden_dim
                         + hidden_dim * hidden_dim
                         + hidden_dim * action_dim)
    transcendentals = 3 * batch * hidden_dim  # tanh on three hidden layers
    bytes_accessed = (2 * batch * state_dim            # x (bf16)
                      + 4 * batch * action_dim         # q out (f32)
                      + 2 * (state_dim * hidden_dim
                             + 2 * hidden_dim * hidden_dim
                             + hidden_dim * action_dim)  # weights (bf16)
                      + 4 * (3 * hidden_dim + action_dim))  # biases (f32)

    out = pl.pallas_call(
        qnet_kernel,
        out_shape=jax.ShapeDtypeStruct((padded_batch, action_dim), jnp.float32),
        grid=grid,
        in_specs=[
            pl.BlockSpec((tb, state_dim), lambda i: (i, 0)),   # x (tiled)
            resident((state_dim, hidden_dim)),                 # w1 (bf16)
            resident((1, hidden_dim)),                         # b1 (f32)
            resident((hidden_dim, hidden_dim)),                # w2 (bf16)
            resident((1, hidden_dim)),                         # b2 (f32)
            resident((hidden_dim, hidden_dim)),                # w3 (bf16)
            resident((1, hidden_dim)),                         # b3 (f32)
            resident((hidden_dim, action_dim)),                # wq (bf16)
            resident((1, action_dim)),                         # bq (f32)
        ],
        out_specs=pl.BlockSpec((tb, action_dim), lambda i: (i, 0)),
        compiler_params=pltpu.CompilerParams(
            dimension_semantics=("parallel",)),
        cost_estimate=pl.CostEstimate(
            flops=flops,
            transcendentals=transcendentals,
            bytes_accessed=bytes_accessed),
    )(x_bf16, w1b, b1, w2b, b2, w3b, b3, wqb, bq)

    return out[:batch]


def orthogonal_linear_params(key, in_features, out_features, gain=0.1):
    """Deterministic orthogonal init (gain=0.1) + zero bias, matching
    init(m, orthogonal_, constant_(0), 0.1).  Weight returned as [in, out]
    (transposed vs PyTorch's [out, in]) so the kernel computes x @ W + b."""
    w_out_in = jax.nn.initializers.orthogonal(scale=gain)(
        key, (out_features, in_features), jnp.float32)
    w = jnp.transpose(w_out_in)               # [in, out]
    b = jnp.zeros((1, out_features), jnp.float32)
    return w, b


def reference_forward(x, w1, b1, w2, b2, w3, b3, wq, bq):
    h = jnp.tanh(x @ w1 + b1)
    h = jnp.tanh(h @ w2 + b2)
    h = jnp.tanh(h @ w3 + b3)
    return h @ wq + bq


if __name__ == "__main__":
    # Module-consistent shapes: hidden_dim=128 (the QNet default), small
    # state/action dims.  batch=600 exercises both wrapper-side padding
    # (600 -> 1024) and a multi-step batch grid (2 tiles of 512).
    batch, state_dim, hidden_dim, action_dim = 600, 16, 128, 8

    key = jax.random.PRNGKey(0)
    kx, k1, k2, k3, kq = jax.random.split(key, 5)

    x = jax.random.normal(kx, (batch, state_dim), jnp.float32)
    w1, b1 = orthogonal_linear_params(k1, state_dim, hidden_dim)
    w2, b2 = orthogonal_linear_params(k2, hidden_dim, hidden_dim)
    w3, b3 = orthogonal_linear_params(k3, hidden_dim, hidden_dim)
    wq, bq = orthogonal_linear_params(kq, hidden_dim, action_dim)

    out = qnet_forward(x, w1, b1, w2, b2, w3, b3, wq, bq)
    out = jax.block_until_ready(out)

    ref = reference_forward(x, w1, b1, w2, b2, w3, b3, wq, bq)
    assert out.shape == (batch, action_dim)
    # bf16 MXU inputs with f32 accumulation -> slightly looser tolerance.
    assert jnp.allclose(out, ref, atol=2e-3, rtol=2e-2), "mismatch vs reference"

    print("KERNEL_OK")
</pallas_src>

<mosaic_0001>
module attributes {stable_mosaic.version = 11 : i64} {
  func.func @qnet_kernel(%arg0: i32, %arg1: memref<512x16xbf16, #tpu.memory_space<vmem>>, %arg2: memref<16x128xbf16, #tpu.memory_space<vmem>>, %arg3: memref<1x128xf32, #tpu.memory_space<vmem>>, %arg4: memref<128x128xbf16, #tpu.memory_space<vmem>>, %arg5: memref<1x128xf32, #tpu.memory_space<vmem>>, %arg6: memref<128x128xbf16, #tpu.memory_space<vmem>>, %arg7: memref<1x128xf32, #tpu.memory_space<vmem>>, %arg8: memref<128x8xbf16, #tpu.memory_space<vmem>>, %arg9: memref<1x8xf32, #tpu.memory_space<vmem>>, %arg10: memref<512x8xf32, #tpu.memory_space<vmem>>) attributes {dimension_semantics = [#tpu.dimension_semantics<parallel>], iteration_bounds = array<i64: 2>, scalar_prefetch = 0 : i64, scratch_operands = 0 : i64, tpu.core_type = #tpu.core_type<tc>, window_params = [{transform_indices = @transform_0, window_bounds = array<i64: 512, 16>}, {pipeline_mode = #tpu.pipeline_mode<synchronous>, transform_indices = @transform_1, window_bounds = array<i64: 16, 128>}, {pipeline_mode = #tpu.pipeline_mode<synchronous>, transform_indices = @transform_2, window_bounds = array<i64: 1, 128>}, {pipeline_mode = #tpu.pipeline_mode<synchronous>, transform_indices = @transform_3, window_bounds = array<i64: 128, 128>}, {pipeline_mode = #tpu.pipeline_mode<synchronous>, transform_indices = @transform_4, window_bounds = array<i64: 1, 128>}, {pipeline_mode = #tpu.pipeline_mode<synchronous>, transform_indices = @transform_5, window_bounds = array<i64: 128, 128>}, {pipeline_mode = #tpu.pipeline_mode<synchronous>, transform_indices = @transform_6, window_bounds = array<i64: 1, 128>}, {pipeline_mode = #tpu.pipeline_mode<synchronous>, transform_indices = @transform_7, window_bounds = array<i64: 128, 8>}, {pipeline_mode = #tpu.pipeline_mode<synchronous>, transform_indices = @transform_8, window_bounds = array<i64: 1, 8>}, {transform_indices = @transform_9, window_bounds = array<i64: 512, 8>}]} {
    %c0 = arith.constant 0 : index
    %c0_0 = arith.constant 0 : index
    %0 = vector.load %arg1[%c0, %c0_0] : memref<512x16xbf16, #tpu.memory_space<vmem>>, vector<512x16xbf16>
    %c0_1 = arith.constant 0 : index
    %c0_2 = arith.constant 0 : index
    %1 = vector.load %arg2[%c0_1, %c0_2] : memref<16x128xbf16, #tpu.memory_space<vmem>>, vector<16x128xbf16>
    %cst = arith.constant dense<0.000000e+00> : vector<512x128xf32>
    %2 = tpu.matmul %0, %1, %cst {dimension_numbers = #tpu.dot_dimension_numbers<[1], [0], [0], [1], [0, 0, 1, 1], [], []>} : vector<512x16xbf16>, vector<16x128xbf16>, vector<512x128xf32> -> vector<512x128xf32>
    %c0_3 = arith.constant 0 : index
    %c0_4 = arith.constant 0 : index
    %3 = vector.load %arg3[%c0_3, %c0_4] : memref<1x128xf32, #tpu.memory_space<vmem>>, vector<1x128xf32>
    %4 = vector.broadcast %3 : vector<1x128xf32> to vector<512x128xf32>
    %5 = arith.addf %2, %4 : vector<512x128xf32>
    %6 = math.tanh %5 : vector<512x128xf32>
    %7 = arith.truncf %6 : vector<512x128xf32> to vector<512x128xbf16>
    %c0_5 = arith.constant 0 : index
    %c0_6 = arith.constant 0 : index
    %8 = vector.load %arg4[%c0_5, %c0_6] : memref<128x128xbf16, #tpu.memory_space<vmem>>, vector<128x128xbf16>
    %cst_7 = arith.constant dense<0.000000e+00> : vector<512x128xf32>
    %9 = tpu.matmul %7, %8, %cst_7 {dimension_numbers = #tpu.dot_dimension_numbers<[1], [0], [0], [1], [0, 0, 1, 1], [], []>} : vector<512x128xbf16>, vector<128x128xbf16>, vector<512x128xf32> -> vector<512x128xf32>
    %c0_8 = arith.constant 0 : index
    %c0_9 = arith.constant 0 : index
    %10 = vector.load %arg5[%c0_8, %c0_9] : memref<1x128xf32, #tpu.memory_space<vmem>>, vector<1x128xf32>
    %11 = vector.broadcast %10 : vector<1x128xf32> to vector<512x128xf32>
    %12 = arith.addf %9, %11 : vector<512x128xf32>
    %13 = math.tanh %12 : vector<512x128xf32>
    %14 = arith.truncf %13 : vector<512x128xf32> to vector<512x128xbf16>
    %c0_10 = arith.constant 0 : index
    %c0_11 = arith.constant 0 : index
    %15 = vector.load %arg6[%c0_10, %c0_11] : memref<128x128xbf16, #tpu.memory_space<vmem>>, vector<128x128xbf16>
    %cst_12 = arith.constant dense<0.000000e+00> : vector<512x128xf32>
    %16 = tpu.matmul %14, %15, %cst_12 {dimension_numbers = #tpu.dot_dimension_numbers<[1], [0], [0], [1], [0, 0, 1, 1], [], []>} : vector<512x128xbf16>, vector<128x128xbf16>, vector<512x128xf32> -> vector<512x128xf32>
    %c0_13 = arith.constant 0 : index
    %c0_14 = arith.constant 0 : index
    %17 = vector.load %arg7[%c0_13, %c0_14] : memref<1x128xf32, #tpu.memory_space<vmem>>, vector<1x128xf32>
    %18 = vector.broadcast %17 : vector<1x128xf32> to vector<512x128xf32>
    %19 = arith.addf %16, %18 : vector<512x128xf32>
    %20 = math.tanh %19 : vector<512x128xf32>
    %21 = arith.truncf %20 : vector<512x128xf32> to vector<512x128xbf16>
    %c0_15 = arith.constant 0 : index
    %c0_16 = arith.constant 0 : index
    %22 = vector.load %arg8[%c0_15, %c0_16] : memref<128x8xbf16, #tpu.memory_space<vmem>>, vector<128x8xbf16>
    %cst_17 = arith.constant dense<0.000000e+00> : vector<512x8xf32>
    %23 = tpu.matmul %21, %22, %cst_17 {dimension_numbers = #tpu.dot_dimension_numbers<[1], [0], [0], [1], [0, 0, 1, 1], [], []>} : vector<512x128xbf16>, vector<128x8xbf16>, vector<512x8xf32> -> vector<512x8xf32>
    %c0_18 = arith.constant 0 : index
    %c0_19 = arith.constant 0 : index
    %24 = vector.load %arg9[%c0_18, %c0_19] : memref<1x8xf32, #tpu.memory_space<vmem>>, vector<1x8xf32>
    %25 = vector.broadcast %24 : vector<1x8xf32> to vector<512x8xf32>
    %26 = arith.addf %23, %25 : vector<512x8xf32>
    %c0_20 = arith.constant 0 : index
    %c0_21 = arith.constant 0 : index
    %27 = vector.load %arg10[%c0_20, %c0_21] : memref<512x8xf32, #tpu.memory_space<vmem>>, vector<512x8xf32>
    tpu.vector_store %arg10[%c0_20, %c0_21], %26 {strides = array<i32>} : memref<512x8xf32, #tpu.memory_space<vmem>>, vector<512x8xf32>,
    return
  }
  func.func @transform_0(%arg0: i32) -> (i32, i32) {
    %c0_i32 = arith.constant 0 : i32
    %c0_i32_0 = arith.constant 0 : i32
    return %arg0, %c0_i32 : i32, i32
  }
  func.func @transform_1(%arg0: i32) -> (i32, i32) {
    %c0_i32 = arith.constant 0 : i32
    %c0_i32_0 = arith.constant 0 : i32
    %c0_i32_1 = arith.constant 0 : i32
    return %c0_i32, %c0_i32_0 : i32, i32
  }
  func.func @transform_2(%arg0: i32) -> (i32, i32) {
    %c0_i32 = arith.constant 0 : i32
    %c0_i32_0 = arith.constant 0 : i32
    %c0_i32_1 = arith.constant 0 : i32
    return %c0_i32, %c0_i32_0 : i32, i32
  }
  func.func @transform_3(%arg0: i32) -> (i32, i32) {
    %c0_i32 = arith.constant 0 : i32
    %c0_i32_0 = arith.constant 0 : i32
    %c0_i32_1 = arith.constant 0 : i32
    return %c0_i32, %c0_i32_0 : i32, i32
  }
  func.func @transform_4(%arg0: i32) -> (i32, i32) {
    %c0_i32 = arith.constant 0 : i32
    %c0_i32_0 = arith.constant 0 : i32
    %c0_i32_1 = arith.constant 0 : i32
    return %c0_i32, %c0_i32_0 : i32, i32
  }
  func.func @transform_5(%arg0: i32) -> (i32, i32) {
    %c0_i32 = arith.constant 0 : i32
    %c0_i32_0 = arith.constant 0 : i32
    %c0_i32_1 = arith.constant 0 : i32
    return %c0_i32, %c0_i32_0 : i32, i32
  }
  func.func @transform_6(%arg0: i32) -> (i32, i32) {
    %c0_i32 = arith.constant 0 : i32
    %c0_i32_0 = arith.constant 0 : i32
    %c0_i32_1 = arith.constant 0 : i32
    return %c0_i32, %c0_i32_0 : i32, i32
  }
  func.func @transform_7(%arg0: i32) -> (i32, i32) {
    %c0_i32 = arith.constant 0 : i32
    %c0_i32_0 = arith.constant 0 : i32
    %c0_i32_1 = arith.constant 0 : i32
    return %c0_i32, %c0_i32_0 : i32, i32
  }
  func.func @transform_8(%arg0: i32) -> (i32, i32) {
    %c0_i32 = arith.constant 0 : i32
    %c0_i32_0 = arith.constant 0 : i32
    %c0_i32_1 = arith.constant 0 : i32
    return %c0_i32, %c0_i32_0 : i32, i32
  }
  func.func @transform_9(%arg0: i32) -> (i32, i32) {
    %c0_i32 = arith.constant 0 : i32
    %c0_i32_0 = arith.constant 0 : i32
    return %arg0, %c0_i32 : i32, i32
  }
}

</mosaic_0001>

<llo_original>
// kernel: qnet_forward.1
$region0: #{qnet_forward.1}
  #allocation0 [shape = 'u32[]', space=smem, size = 0x4, offset = 0x4, fixed_abs, tag = 'smem constant byte address 0x4 - core index']
  #allocation1 [shape = 'u32[72,128]{1,0:T(1,128)}', space=vmem, size = 0x9000, scoped, tag = 'internal scratch']
  %s0 = inlined_call_operand.vmem [shape: bf16[1024,16], index: 0, kind: input, shape index: {}]
  %s1 = inlined_call_operand.vmem [shape: bf16[16,128], index: 1, kind: input, shape index: {}]
  %s2 = inlined_call_operand.vmem [shape: f32[1,128], index: 2, kind: input, shape index: {}]
  %s3 = inlined_call_operand.vmem [shape: bf16[128,128], index: 3, kind: input, shape index: {}]
  %s4 = inlined_call_operand.vmem [shape: f32[1,128], index: 4, kind: input, shape index: {}]
  %s5 = inlined_call_operand.vmem [shape: bf16[128,128], index: 5, kind: input, shape index: {}]
  %s6 = inlined_call_operand.vmem [shape: f32[1,128], index: 6, kind: input, shape index: {}]
  %s7 = inlined_call_operand.vmem [shape: bf16[128,8], index: 7, kind: input, shape index: {}]
  %s8 = inlined_call_operand.vmem [shape: f32[1,8], index: 8, kind: input, shape index: {}]
  %s9 = inlined_call_operand.vmem [shape: f32[1024,8], index: 9, kind: output, shape index: {}]
  %s10 = sld [smem:[#allocation0]]
  $region69: #{qnet_forward.1} parent=0
    _
  %s12 = ssub.s32 1, %s10
  %s13 = scalar_select 0, %s12, %s10
  loop: start=0, step=1, limit=4
  $region2: #{qnet_forward.1} parent=0 // loop_pre_header
    _
  $region3: #{qnet_forward.1} parent=0 // loop_header
    %s15 = sphi 0, %s19
    %p16 = scmp.ge.s32.totalorder %s15, 4
    %s25 = sphi 0, %s27
    %s28 = sphi 0, %s25
    %s29 = sphi 0, %s28
    %s45 = sphi 0, %s29
    %s49 = sphi 0, %s49
    %s51 = sphi 0, %s49
    %s52 = sphi 0, %s51
    %s66 = sphi 0, %s52
    %s70 = sphi 0, %s70
    %s72 = sphi 0, %s70
    %s73 = sphi 0, %s72
    %s87 = sphi 0, %s73
    %s91 = sphi 0, %s91
    %s93 = sphi 0, %s91
    %s94 = sphi 0, %s93
    %s108 = sphi 0, %s94
    %s112 = sphi 0, %s112
    %s114 = sphi 0, %s112
    %s115 = sphi 0, %s114
    %s129 = sphi 0, %s115
    %s133 = sphi 0, %s133
    %s135 = sphi 0, %s133
    %s136 = sphi 0, %s135
    %s150 = sphi 0, %s136
    %s154 = sphi 0, %s154
    %s156 = sphi 0, %s154
    %s157 = sphi 0, %s156
    %s171 = sphi 0, %s157
    %s175 = sphi 0, %s175
    %s177 = sphi 0, %s175
    %s178 = sphi 0, %s177
    %s192 = sphi 0, %s178
    %s196 = sphi 0, %s196
    %s198 = sphi 0, %s196
    %s199 = sphi 0, %s198
    %s213 = sphi 0, %s199
    %s219 = sphi 0, %s221
    %s222 = sphi 0, %s219
    %s223 = sphi 0, %s222
    %s239 = sphi 0, %s223
  $region4: #{qnet_forward.1} parent=0 // loop_header_branch
    %18 = sbr.rel (%p16) target = $region8
  $region5: #{qnet_forward.1} parent=0 // loop_body
    %s20 = ssub.s32 %s15, 1
    %s21 = ssub.s32 %s15, 2
    %s22 = sadd.s32 %s15, 1
    %s23 = ssub.s32 %s15, %s22
    %p24 = scmp.eq.s32.totalorder %s23, 0
    %s26 = sadd.s32 %s25, 1
    %s27 = scalar_select %p24, %s25, %s26
    %p30 = pneg %p24
    %p31 = scmp.eq.s32.totalorder %s15, 1
    %p32 = por %p30, %p31
    %p33 = scmp.ne.s32.totalorder %s25, %s28
    %p34 = scmp.eq.s32.totalorder %s15, 0
    %p35 = por %p33, %p34
    %p36 = scmp.ne.s32.totalorder %s25, %s28
    %p37 = scmp.eq.s32.totalorder %s20, 1
    %p38 = por %p36, %p37
    %p39 = scmp.ne.s32.totalorder %s28, %s29
    %p40 = scmp.eq.s32.totalorder %s20, 0
    %p41 = por %p39, %p40
    %p42 = scmp.ne.s32.totalorder %s28, %s29
    %p43 = scmp.eq.s32.totalorder %s21, 1
    %p44 = por %p42, %p43
    %p46 = scmp.ne.s32.totalorder %s29, %s45
    %p47 = scmp.eq.s32.totalorder %s21, 0
    %p48 = por %p46, %p47
    %s50 = sadd.s32 %s49, 1
    %p53 = scmp.eq.s32.totalorder %s15, 1
    %p54 = scmp.ne.s32.totalorder %s49, %s51
    %p55 = scmp.eq.s32.totalorder %s15, 0
    %p56 = por %p54, %p55
    %p57 = scmp.ne.s32.totalorder %s49, %s51
    %p58 = scmp.eq.s32.totalorder %s20, 1
    %p59 = por %p57, %p58
    %p60 = scmp.ne.s32.totalorder %s51, %s52
    %p61 = scmp.eq.s32.totalorder %s20, 0
    %p62 = por %p60, %p61
    %p63 = scmp.ne.s32.totalorder %s51, %s52
    %p64 = scmp.eq.s32.totalorder %s21, 1
    %p65 = por %p63, %p64
    %p67 = scmp.ne.s32.totalorder %s52, %s66
    %p68 = scmp.eq.s32.totalorder %s21, 0
    %p69 = por %p67, %p68
    %s71 = sadd.s32 %s70, 1
    %p74 = scmp.eq.s32.totalorder %s15, 1
    %p75 = scmp.ne.s32.totalorder %s70, %s72
    %p76 = scmp.eq.s32.totalorder %s15, 0
    %p77 = por %p75, %p76
    %p78 = scmp.ne.s32.totalorder %s70, %s72
    %p79 = scmp.eq.s32.totalorder %s20, 1
    %p80 = por %p78, %p79
    %p81 = scmp.ne.s32.totalorder %s72, %s73
    %p82 = scmp.eq.s32.totalorder %s20, 0
    %p83 = por %p81, %p82
    %p84 = scmp.ne.s32.totalorder %s72, %s73
    %p85 = scmp.eq.s32.totalorder %s21, 1
    %p86 = por %p84, %p85
    %p88 = scmp.ne.s32.totalorder %s73, %s87
    %p89 = scmp.eq.s32.totalorder %s21, 0
    %p90 = por %p88, %p89
    %s92 = sadd.s32 %s91, 1
    %p95 = scmp.eq.s32.totalorder %s15, 1
    %p96 = scmp.ne.s32.totalorder %s91, %s93
    %p97 = scmp.eq.s32.totalorder %s15, 0
    %p98 = por %p96, %p97
    %p99 = scmp.ne.s32.totalorder %s91, %s93
    %p100 = scmp.eq.s32.totalorder %s20, 1
    %p101 = por %p99, %p100
    %p102 = scmp.ne.s32.totalorder %s93, %s94
    %p103 = scmp.eq.s32.totalorder %s20, 0
    %p104 = por %p102, %p103
    %p105 = scmp.ne.s32.totalorder %s93, %s94
    %p106 = scmp.eq.s32.totalorder %s21, 1
    %p107 = por %p105, %p106
    %p109 = scmp.ne.s32.totalorder %s94, %s108
    %p110 = scmp.eq.s32.totalorder %s21, 0
    %p111 = por %p109, %p110
    %s113 = sadd.s32 %s112, 1
    %p116 = scmp.eq.s32.totalorder %s15, 1
    %p117 = scmp.ne.s32.totalorder %s112, %s114
    %p118 = scmp.eq.s32.totalorder %s15, 0
    %p119 = por %p117, %p118
    %p120 = scmp.ne.s32.totalorder %s112, %s114
    %p121 = scmp.eq.s32.totalorder %s20, 1
    %p122 = por %p120, %p121
    %p123 = scmp.ne.s32.totalorder %s114, %s115
    %p124 = scmp.eq.s32.totalorder %s20, 0
    %p125 = por %p123, %p124
    %p126 = scmp.ne.s32.totalorder %s114, %s115
    %p127 = scmp.eq.s32.totalorder %s21, 1
    %p128 = por %p126, %p127
    %p130 = scmp.ne.s32.totalorder %s115, %s129
    %p131 = scmp.eq.s32.totalorder %s21, 0
    %p132 = por %p130, %p131
    %s134 = sadd.s32 %s133, 1
    %p137 = scmp.eq.s32.totalorder %s15, 1
    %p138 = scmp.ne.s32.totalorder %s133, %s135
    %p139 = scmp.eq.s32.totalorder %s15, 0
    %p140 = por %p138, %p139
    %p141 = scmp.ne.s32.totalorder %s133, %s135
    %p142 = scmp.eq.s32.totalorder %s20, 1
    %p143 = por %p141, %p142
    %p144 = scmp.ne.s32.totalorder %s135, %s136
    %p145 = scmp.eq.s32.totalorder %s20, 0
    %p146 = por %p144, %p145
    %p147 = scmp.ne.s32.totalorder %s135, %s136
    %p148 = scmp.eq.s32.totalorder %s21, 1
    %p149 = por %p147, %p148
    %p151 = scmp.ne.s32.totalorder %s136, %s150
    %p152 = scmp.eq.s32.totalorder %s21, 0
    %p153 = por %p151, %p152
    %s155 = sadd.s32 %s154, 1
    %p158 = scmp.eq.s32.totalorder %s15, 1
    %p159 = scmp.ne.s32.totalorder %s154, %s156
    %p160 = scmp.eq.s32.totalorder %s15, 0
    %p161 = por %p159, %p160
    %p162 = scmp.ne.s32.totalorder %s154, %s156
    %p163 = scmp.eq.s32.totalorder %s20, 1
    %p164 = por %p162, %p163
    %p165 = scmp.ne.s32.totalorder %s156, %s157
    %p166 = scmp.eq.s32.totalorder %s20, 0
    %p167 = por %p165, %p166
    %p168 = scmp.ne.s32.totalorder %s156, %s157
    %p169 = scmp.eq.s32.totalorder %s21, 1
    %p170 = por %p168, %p169
    %p172 = scmp.ne.s32.totalorder %s157, %s171
    %p173 = scmp.eq.s32.totalorder %s21, 0
    %p174 = por %p172, %p173
    %s176 = sadd.s32 %s175, 1
    %p179 = scmp.eq.s32.totalorder %s15, 1
    %p180 = scmp.ne.s32.totalorder %s175, %s177
    %p181 = scmp.eq.s32.totalorder %s15, 0
    %p182 = por %p180, %p181
    %p183 = scmp.ne.s32.totalorder %s175, %s177
    %p184 = scmp.eq.s32.totalorder %s20, 1
    %p185 = por %p183, %p184
    %p186 = scmp.ne.s32.totalorder %s177, %s178
    %p187 = scmp.eq.s32.totalorder %s20, 0
    %p188 = por %p186, %p187
    %p189 = scmp.ne.s32.totalorder %s177, %s178
    %p190 = scmp.eq.s32.totalorder %s21, 1
    %p191 = por %p189, %p190
    %p193 = scmp.ne.s32.totalorder %s178, %s192
    %p194 = scmp.eq.s32.totalorder %s21, 0
    %p195 = por %p193, %p194
    %s197 = sadd.s32 %s196, 1
    %p200 = scmp.eq.s32.totalorder %s15, 1
    %p201 = scmp.ne.s32.totalorder %s196, %s198
    %p202 = scmp.eq.s32.totalorder %s15, 0
    %p203 = por %p201, %p202
    %p204 = scmp.ne.s32.totalorder %s196, %s198
    %p205 = scmp.eq.s32.totalorder %s20, 1
    %p206 = por %p204, %p205
    %p207 = scmp.ne.s32.totalorder %s198, %s199
    %p208 = scmp.eq.s32.totalorder %s20, 0
    %p209 = por %p207, %p208
    %p210 = scmp.ne.s32.totalorder %s198, %s199
    %p211 = scmp.eq.s32.totalorder %s21, 1
    %p212 = por %p210, %p211
    %p214 = scmp.ne.s32.totalorder %s199, %s213
    %p215 = scmp.eq.s32.totalorder %s21, 0
    %p216 = por %p214, %p215
    %s217 = ssub.s32 %s15, %s22
    %p218 = scmp.eq.s32.totalorder %s217, 0
    %s220 = sadd.s32 %s219, 1
    %s221 = scalar_select %p218, %s219, %s220
    %p224 = pneg %p218
    %p225 = scmp.eq.s32.totalorder %s15, 1
    %p226 = por %p224, %p225
    %p227 = scmp.ne.s32.totalorder %s219, %s222
    %p228 = scmp.eq.s32.totalorder %s15, 0
    %p229 = por %p227, %p228
    %p230 = scmp.ne.s32.totalorder %s219, %s222
    %p231 = scmp.eq.s32.totalorder %s20, 1
    %p232 = por %p230, %p231
    %p233 = scmp.ne.s32.totalorder %s222, %s223
    %p234 = scmp.eq.s32.totalorder %s20, 0
    %p235 = por %p233, %p234
    %p236 = scmp.ne.s32.totalorder %s222, %s223
    %p237 = scmp.eq.s32.totalorder %s21, 1
    %p238 = por %p236, %p237
    %p240 = scmp.ne.s32.totalorder %s223, %s239
    %p241 = scmp.eq.s32.totalorder %s21, 0
    %p242 = por %p240, %p241
    %p243 = scmp.le.s32.totalorder 1, %s15
    %p244 = scmp.lt.s32.totalorder %s15, 3
    %p245 = pnand %p243, %p244
    %p246 = pneg %p245
    // Predicated region
    $region9: #{qnet_forward.1} parent=5 // pred_check
      _
    $region10: #{qnet_forward.1} parent=5 // pred_check_branch
      %248 = sbr.rel (%p245) target = $region12
    $region11: #{qnet_forward.1} parent=5 // pred_region
      %s249 = ssub.s32 %s15, 1
      // Predicated region
      $region13: #{qnet_forward.1} parent=11 // pred_check
        %p250 = pneg %p62
      $region14: #{qnet_forward.1} parent=11 // pred_check_branch
        %252 = sbr.rel (%p250) target = $region16
      $region15: #{qnet_forward.1} parent=11 // pred_region
        _
      $region16: #{qnet_forward.1} parent=11 // pred_fallthru
        _
      // Predicated region
      $region17: #{qnet_forward.1} parent=11 // pred_check
        %p253 = pneg %p83
      $region18: #{qnet_forward.1} parent=11 // pred_check_branch
        %255 = sbr.rel (%p253) target = $region20
      $region19: #{qnet_forward.1} parent=11 // pred_region
        _
      $region20: #{qnet_forward.1} parent=11 // pred_fallthru
        _
      // Predicated region
      $region21: #{qnet_forward.1} parent=11 // pred_check
        %p256 = pneg %p104
      $region22: #{qnet_forward.1} parent=11 // pred_check_branch
        %258 = sbr.rel (%p256) target = $region24
      $region23: #{qnet_forward.1} parent=11 // pred_region
        _
      $region24: #{qnet_forward.1} parent=11 // pred_fallthru
        _
      // Predicated region
      $region25: #{qnet_forward.1} parent=11 // pred_check
        %p259 = pneg %p125
      $region26: #{qnet_forward.1} parent=11 // pred_check_branch
        %261 = sbr.rel (%p259) target = $region28
      $region27: #{qnet_forward.1} parent=11 // pred_region
        _
      $region28: #{qnet_forward.1} parent=11 // pred_fallthru
        _
      // Predicated region
      $region29: #{qnet_forward.1} parent=11 // pred_check
        %p262 = pneg %p146
      $region30: #{qnet_forward.1} parent=11 // pred_check_branch
        %264 = sbr.rel (%p262) target = $region32
      $region31: #{qnet_forward.1} parent=11 // pred_region
        _
      $region32: #{qnet_forward.1} parent=11 // pred_fallthru
        _
      // Predicated region
      $region33: #{qnet_forward.1} parent=11 // pred_check
        %p265 = pneg %p167
      $region34: #{qnet_forward.1} parent=11 // pred_check_branch
        %267 = sbr.rel (%p265) target = $region36
      $region35: #{qnet_forward.1} parent=11 // pred_region
        _
      $region36: #{qnet_forward.1} parent=11 // pred_fallthru
        _
      // Predicated region
      $region37: #{qnet_forward.1} parent=11 // pred_check
        %p268 = pneg %p188
      $region38: #{qnet_forward.1} parent=11 // pred_check_branch
        %270 = sbr.rel (%p268) target = $region40
      $region39: #{qnet_forward.1} parent=11 // pred_region
        _
      $region40: #{qnet_forward.1} parent=11 // pred_fallthru
        _
      // Predicated region
      $region41: #{qnet_forward.1} parent=11 // pred_check
        %p271 = pneg %p209
      $region42: #{qnet_forward.1} parent=11 // pred_check_branch
        %273 = sbr.rel (%p271) target = $region44
      $region43: #{qnet_forward.1} parent=11 // pred_region
        _
      $region44: #{qnet_forward.1} parent=11 // pred_fallthru
        _
    $region12: #{qnet_forward.1} parent=5 // pred_fallthru
      _
    %p274 = scmp.lt.s32.totalorder %s15, 2
    // Predicated region
    $region45: #{qnet_forward.1} parent=5 // pred_check
      %p275 = pneg %p274
    $region46: #{qnet_forward.1} parent=5 // pred_check_branch
      %277 = sbr.rel (%p275) target = $region48
    $region47: #{qnet_forward.1} parent=5 // pred_region
      // Predicated region
      $region49: #{qnet_forward.1} parent=47 // pred_check
        %p278 = pneg %p35
      $region50: #{qnet_forward.1} parent=47 // pred_check_branch
        %280 = sbr.rel (%p278) target = $region52
      $region51: #{qnet_forward.1} parent=47 // pred_region
        %s281 = smul.u32 64, %s15
        %p282 = scmp.lt.s32.totalorder %s281, 127
        %s283 = scalar_select %p282, %s281, 127
        %s284 = smul.addr %s283, 4
        %s285 = scalar_lea.vmem %s0, %s284
        %s286 = smul.u32 64, %s15
      $region52: #{qnet_forward.1} parent=47 // pred_fallthru
        _
    $region48: #{qnet_forward.1} parent=5 // pred_fallthru
      _
    %p287 = scmp.le.s32.totalorder 1, %s15
    %p288 = scmp.lt.s32.totalorder %s15, 3
    %p289 = pnand %p287, %p288
    %p290 = pneg %p289
    // Predicated region
    $region53: #{qnet_forward.1} parent=5 // pred_check
      _
    $region54: #{qnet_forward.1} parent=5 // pred_check_branch
      %292 = sbr.rel (%p289) target = $region56
    $region55: #{qnet_forward.1} parent=5 // pred_region
      %s293 = ssub.s32 %s15, 1
      %s294 = smul.u32 64, %s20
      %p295 = scmp.lt.s32.totalorder %s294, 127
      %s296 = scalar_select %p295, %s294, 127
      %s297 = smul.addr %s296, 4
      %s298 = scalar_lea.vmem %s0, %s297
      %p299 = pneg %p41
      %p300 = pneg %p38
      %p301 = pneg %p62
      %p302 = pneg %p59
      %p303 = pneg %p83
      %p304 = pneg %p80
      %p305 = pneg %p104
      %p306 = pneg %p101
      %p307 = pneg %p125
      %p308 = pneg %p122
      %p309 = pneg %p146
      %p310 = pneg %p143
      %p311 = pneg %p167
      %p312 = pneg %p164
      %p313 = pneg %p188
      %p314 = pneg %p185
      %p315 = pneg %p209
      %p316 = pneg %p206
      %p317 = pneg %p235
      %p318 = pneg %p232
      %s319 = smul.u32 64, %s20
      %p320 = scmp.lt.s32.totalorder %s319, 127
      %s321 = scalar_select %p320, %s319, 127
      %s322 = smul.addr %s321, 8
      %s323 = scalar_lea.vmem %s9, %s322
      %s324 = smul.u32 64, %s20
      %p325 = scmp.lt.s32.totalorder %s324, 127
      %s326 = scalar_select %p325, %s324, 127
      %s327 = smul.addr %s326, 4
      %s328 = scalar_lea.vmem %s0, %s327
      %s329 = smul.u32 64, %s20
      %s330 = smul.u32 64, %s20
      %p331 = scmp.lt.s32.totalorder %s330, 127
      %s332 = scalar_select %p331, %s330, 127
      %s333 = smul.addr %s332, 8
      %s334 = scalar_lea.vmem %s9, %s333
      %s335 = smul.u32 64, %s20
      %v337 = vld [vmem:[%s328] sm:$0xf]
      %v338 = vld [vmem:[%s328 + $0x4] sm:$0xf]
      %v339 = vld [vmem:[%s328 + $0x8] sm:$0xf]
      %v340 = vld [vmem:[%s328 + $0xc] sm:$0xf]
      %v341 = vld [vmem:[%s328 + $0x10] sm:$0xf]
      %v342 = vld [vmem:[%s328 + $0x14] sm:$0xf]
      %v343 = vld [vmem:[%s328 + $0x18] sm:$0xf]
      %v344 = vld [vmem:[%s328 + $0x1c] sm:$0xf]
      %v345 = vld [vmem:[%s328 + $0x20] sm:$0xf]
      %v346 = vld [vmem:[%s328 + $0x24] sm:$0xf]
      %v347 = vld [vmem:[%s328 + $0x28] sm:$0xf]
      %v348 = vld [vmem:[%s328 + $0x2c] sm:$0xf]
      %v349 = vld [vmem:[%s328 + $0x30] sm:$0xf]
      %v350 = vld [vmem:[%s328 + $0x34] sm:$0xf]
      %v351 = vld [vmem:[%s328 + $0x38] sm:$0xf]
      %v352 = vld [vmem:[%s328 + $0x3c] sm:$0xf]
      %v353 = vld [vmem:[%s328 + $0x40] sm:$0xf]
      %v354 = vld [vmem:[%s328 + $0x44] sm:$0xf]
      %v355 = vld [vmem:[%s328 + $0x48] sm:$0xf]
      %v356 = vld [vmem:[%s328 + $0x4c] sm:$0xf]
      %v357 = vld [vmem:[%s328 + $0x50] sm:$0xf]
      %v358 = vld [vmem:[%s328 + $0x54] sm:$0xf]
      %v359 = vld [vmem:[%s328 + $0x58] sm:$0xf]
      %v360 = vld [vmem:[%s328 + $0x5c] sm:$0xf]
      %v361 = vld [vmem:[%s328 + $0x60] sm:$0xf]
      %v362 = vld [vmem:[%s328 + $0x64] sm:$0xf]
      %v363 = vld [vmem:[%s328 + $0x68] sm:$0xf]
      %v364 = vld [vmem:[%s328 + $0x6c] sm:$0xf]
      %v365 = vld [vmem:[%s328 + $0x70] sm:$0xf]
      %v366 = vld [vmem:[%s328 + $0x74] sm:$0xf]
      %v367 = vld [vmem:[%s328 + $0x78] sm:$0xf]
      %v368 = vld [vmem:[%s328 + $0x7c] sm:$0xf]
      %v369 = vld [vmem:[%s328 + $0x80] sm:$0xf]
      %v370 = vld [vmem:[%s328 + $0x84] sm:$0xf]
      %v371 = vld [vmem:[%s328 + $0x88] sm:$0xf]
      %v372 = vld [vmem:[%s328 + $0x8c] sm:$0xf]
      %v373 = vld [vmem:[%s328 + $0x90] sm:$0xf]
      %v374 = vld [vmem:[%s328 + $0x94] sm:$0xf]
      %v375 = vld [vmem:[%s328 + $0x98] sm:$0xf]
      %v376 = vld [vmem:[%s328 + $0x9c] sm:$0xf]
      %v377 = vld [vmem:[%s328 + $0xa0] sm:$0xf]
      %v378 = vld [vmem:[%s328 + $0xa4] sm:$0xf]
      %v379 = vld [vmem:[%s328 + $0xa8] sm:$0xf]
      %v380 = vld [vmem:[%s328 + $0xac] sm:$0xf]
      %v381 = vld [vmem:[%s328 + $0xb0] sm:$0xf]
      %v382 = vld [vmem:[%s328 + $0xb4] sm:$0xf]
      %v383 = vld [vmem:[%s328 + $0xb8] sm:$0xf]
      %v384 = vld [vmem:[%s328 + $0xbc] sm:$0xf]
      %v385 = vld [vmem:[%s328 + $0xc0] sm:$0xf]
      %v386 = vld [vmem:[%s328 + $0xc4] sm:$0xf]
      %v387 = vld [vmem:[%s328 + $0xc8] sm:$0xf]
      %v388 = vld [vmem:[%s328 + $0xcc] sm:$0xf]
      %v389 = vld [vmem:[%s328 + $0xd0] sm:$0xf]
      %v390 = vld [vmem:[%s328 + $0xd4] sm:$0xf]
      %v391 = vld [vmem:[%s328 + $0xd8] sm:$0xf]
      %v392 = vld [vmem:[%s328 + $0xdc] sm:$0xf]
      %v393 = vld [vmem:[%s328 + $0xe0] sm:$0xf]
      %v394 = vld [vmem:[%s328 + $0xe4] sm:$0xf]
      %v395 = vld [vmem:[%s328 + $0xe8] sm:$0xf]
      %v396 = vld [vmem:[%s328 + $0xec] sm:$0xf]
      %v397 = vld [vmem:[%s328 + $0xf0] sm:$0xf]
      %v398 = vld [vmem:[%s328 + $0xf4] sm:$0xf]
      %v399 = vld [vmem:[%s328 + $0xf8] sm:$0xf]
      %v400 = vld [vmem:[%s328 + $0xfc] sm:$0xf]
      %v401 = vld [vmem:[%s1] sm:$0xf]
      %v402 = vld [vmem:[%s1 + $0x4] sm:$0xf]
      %v403 = vld [vmem:[%s2] sm:$0x1]
      %v405 = vperm.slane %v403, 0
      %v471 = vunpack.c.l.b16 %v337
      %v472 = vunpack.c.l.b16 %v338
      %v473 = vunpack.c.l.b16 %v339
      %v474 = vunpack.c.l.b16 %v340
      %v475 = vunpack.c.l.b16 %v341
      %v476 = vunpack.c.l.b16 %v342
      %v477 = vunpack.c.l.b16 %v343
      %v478 = vunpack.c.l.b16 %v344
      %v479 = vunpack.c.l.b16 %v345
      %v480 = vunpack.c.l.b16 %v346
      %v481 = vunpack.c.l.b16 %v347
      %v482 = vunpack.c.l.b16 %v348
      %v483 = vunpack.c.l.b16 %v349
      %v484 = vunpack.c.l.b16 %v350
      %v485 = vunpack.c.l.b16 %v351
      %v486 = vunpack.c.l.b16 %v352
      %v487 = vunpack.c.l.b16 %v353
      %v488 = vunpack.c.l.b16 %v354
      %v489 = vunpack.c.l.b16 %v355
      %v490 = vunpack.c.l.b16 %v356
      %v491 = vunpack.c.l.b16 %v357
      %v492 = vunpack.c.l.b16 %v358
      %v493 = vunpack.c.l.b16 %v359
      %v494 = vunpack.c.l.b16 %v360
      %v495 = vunpack.c.l.b16 %v361
      %v496 = vunpack.c.l.b16 %v362
      %v497 = vunpack.c.l.b16 %v363
      %v498 = vunpack.c.l.b16 %v364
      %v499 = vunpack.c.l.b16 %v365
      %v500 = vunpack.c.l.b16 %v366
      %v501 = vunpack.c.l.b16 %v367
      %v502 = vunpack.c.l.b16 %v368
      %v503 = vunpack.c.l.b16 %v369
      %v504 = vunpack.c.l.b16 %v370
      %v505 = vunpack.c.l.b16 %v371
      %v506 = vunpack.c.l.b16 %v372
      %v507 = vunpack.c.l.b16 %v373
      %v508 = vunpack.c.l.b16 %v374
      %v509 = vunpack.c.l.b16 %v375
      %v510 = vunpack.c.l.b16 %v376
      %v511 = vunpack.c.l.b16 %v377
      %v512 = vunpack.c.l.b16 %v378
      %v513 = vunpack.c.l.b16 %v379
      %v514 = vunpack.c.l.b16 %v380
      %v515 = vunpack.c.l.b16 %v381
      %v516 = vunpack.c.l.b16 %v382
      %v517 = vunpack.c.l.b16 %v383
      %v518 = vunpack.c.l.b16 %v384
      %v519 = vunpack.c.l.b16 %v385
      %v520 = vunpack.c.l.b16 %v386
      %v521 = vunpack.c.l.b16 %v387
      %v522 = vunpack.c.l.b16 %v388
      %v523 = vunpack.c.l.b16 %v389
      %v524 = vunpack.c.l.b16 %v390
      %v525 = vunpack.c.l.b16 %v391
      %v526 = vunpack.c.l.b16 %v392
      %v527 = vunpack.c.l.b16 %v393
      %v528 = vunpack.c.l.b16 %v394
      %v529 = vunpack.c.l.b16 %v395
      %v530 = vunpack.c.l.b16 %v396
      %v531 = vunpack.c.l.b16 %v397
      %v532 = vunpack.c.l.b16 %v398
      %v533 = vunpack.c.l.b16 %v399
      %v534 = vunpack.c.l.b16 %v400
      %v535 = vpack.c.b16 %v472, %v471
      %v536 = vpack.c.b16 %v474, %v473
      %v537 = vpack.c.b16 %v476, %v475
      %v538 = vpack.c.b16 %v478, %v477
      %v539 = vpack.c.b16 %v480, %v479
      %v540 = vpack.c.b16 %v482, %v481
      %v541 = vpack.c.b16 %v484, %v483
      %v542 = vpack.c.b16 %v486, %v485
      %v543 = vpack.c.b16 %v488, %v487
      %v544 = vpack.c.b16 %v490, %v489
      %v545 = vpack.c.b16 %v492, %v491
      %v546 = vpack.c.b16 %v494, %v493
      %v547 = vpack.c.b16 %v496, %v495
      %v548 = vpack.c.b16 %v498, %v497
      %v549 = vpack.c.b16 %v500, %v499
      %v550 = vpack.c.b16 %v502, %v501
      %v551 = vpack.c.b16 %v504, %v503
      %v552 = vpack.c.b16 %v506, %v505
      %v553 = vpack.c.b16 %v508, %v507
      %v554 = vpack.c.b16 %v510, %v509
      %v555 = vpack.c.b16 %v512, %v511
      %v556 = vpack.c.b16 %v514, %v513
      %v557 = vpack.c.b16 %v516, %v515
      %v558 = vpack.c.b16 %v518, %v517
      %v559 = vpack.c.b16 %v520, %v519
      %v560 = vpack.c.b16 %v522, %v521
      %v561 = vpack.c.b16 %v524, %v523
      %v562 = vpack.c.b16 %v526, %v525
      %v563 = vpack.c.b16 %v528, %v527
      %v564 = vpack.c.b16 %v530, %v529
      %v565 = vpack.c.b16 %v532, %v531
      %v566 = vpack.c.b16 %v534, %v533
      %v569 = vunpack.c.l.b16 %v401
      %v570 = vunpack.c.l.b16 %v402
      %v571 = vpack.c.b16 %v570, %v569
      %vm573 = vcmask 130048
      %v575 = vsel %vm573, %v535, 0
      %v578 = vsel %vm573, %v536, 0
      %v581 = vsel %vm573, %v537, 0
      %v584 = vsel %vm573, %v538, 0
      %v587 = vsel %vm573, %v539, 0
      %v590 = vsel %vm573, %v540, 0
      %v593 = vsel %vm573, %v541, 0
      %v596 = vsel %vm573, %v542, 0
      %v599 = vsel %vm573, %v543, 0
      %v602 = vsel %vm573, %v544, 0
      %v605 = vsel %vm573, %v545, 0
      %v608 = vsel %vm573, %v546, 0
      %v611 = vsel %vm573, %v547, 0
      %v614 = vsel %vm573, %v548, 0
      %v617 = vsel %vm573, %v549, 0
      %v620 = vsel %vm573, %v550, 0
      %v623 = vsel %vm573, %v551, 0
      %v626 = vsel %vm573, %v552, 0
      %v629 = vsel %vm573, %v553, 0
      %v632 = vsel %vm573, %v554, 0
      %v635 = vsel %vm573, %v555, 0
      %v638 = vsel %vm573, %v556, 0
      %v641 = vsel %vm573, %v557, 0
      %v644 = vsel %vm573, %v558, 0
      %v647 = vsel %vm573, %v559, 0
      %v650 = vsel %vm573, %v560, 0
      %v653 = vsel %vm573, %v561, 0
      %v656 = vsel %vm573, %v562, 0
      %v659 = vsel %vm573, %v563, 0
      %v662 = vsel %vm573, %v564, 0
      %v665 = vsel %vm573, %v565, 0
      %v668 = vsel %vm573, %v566, 0
      %670 = vmatpush.bf16.msra.mxu0 0
      %671 = vmatpush.bf16.msra.mxu0 0
      %672 = vmatpush.bf16.msra.mxu0 0
      %673 = vmatpush.bf16.msra.mxu0 0
      %674 = vmatpush.bf16.msra.mxu0 0
      %675 = vmatpush.bf16.msra.mxu0 0
      %676 = vmatpush.bf16.msra.mxu0 0
      %677 = vmatpush.bf16.msra.mxu0 %v571
      %678 = vmatmul.bf16.gmra.mxu0 %v575
      %v679 = vpop.f32.mrf.mxu0
      %v680 = vadd.f32 %v405, %v679
      %v681 = vpop.f32.mrf.mxu0
      %v682 = vadd.f32 %v405, %v681
      %683 = vmatmul.bf16.gmra.mxu0 %v578
      %v684 = vpop.f32.mrf.mxu0
      %v685 = vadd.f32 %v405, %v684
      %v686 = vpop.f32.mrf.mxu0
      %v687 = vadd.f32 %v405, %v686
      %688 = vmatmul.bf16.gmra.mxu0 %v581
      %v689 = vpop.f32.mrf.mxu0
      %v690 = vadd.f32 %v405, %v689
      %v691 = vpop.f32.mrf.mxu0
      %v692 = vadd.f32 %v405, %v691
      %693 = vmatmul.bf16.gmra.mxu0 %v584
      %v694 = vpop.f32.mrf.mxu0
      %v695 = vadd.f32 %v405, %v694
      %v696 = vpop.f32.mrf.mxu0
      %v697 = vadd.f32 %v405, %v696
      %698 = vmatmul.bf16.gmra.mxu0 %v587
      %v699 = vpop.f32.mrf.mxu0
      %v700 = vadd.f32 %v405, %v699
      %v701 = vpop.f32.mrf.mxu0
      %v702 = vadd.f32 %v405, %v701
      %703 = vmatmul.bf16.gmra.mxu0 %v590
      %v704 = vpop.f32.mrf.mxu0
      %v705 = vadd.f32 %v405, %v704
      %v706 = vpop.f32.mrf.mxu0
      %v707 = vadd.f32 %v405, %v706
      %708 = vmatmul.bf16.gmra.mxu0 %v593
      %v709 = vpop.f32.mrf.mxu0
      %v710 = vadd.f32 %v405, %v709
      %v711 = vpop.f32.mrf.mxu0
      %v712 = vadd.f32 %v405, %v711
      %713 = vmatmul.bf16.gmra.mxu0 %v596
      %v714 = vpop.f32.mrf.mxu0
      %v715 = vadd.f32 %v405, %v714
      %v716 = vpop.f32.mrf.mxu0
      %v717 = vadd.f32 %v405, %v716
      %718 = vmatmul.bf16.gmra.mxu0 %v599
      %v719 = vpop.f32.mrf.mxu0
      %v720 = vadd.f32 %v405, %v719
      %v721 = vpop.f32.mrf.mxu0
      %v722 = vadd.f32 %v405, %v721
      %723 = vmatmul.bf16.gmra.mxu0 %v602
      %v724 = vpop.f32.mrf.mxu0
      %v725 = vadd.f32 %v405, %v724
      %v726 = vpop.f32.mrf.mxu0
      %v727 = vadd.f32 %v405, %v726
      %728 = vmatmul.bf16.gmra.mxu0 %v605
      %v729 = vpop.f32.mrf.mxu0
      %v730 = vadd.f32 %v405, %v729
      %v731 = vpop.f32.mrf.mxu0
      %v732 = vadd.f32 %v405, %v731
      %733 = vmatmul.bf16.gmra.mxu0 %v608
      %v734 = vpop.f32.mrf.mxu0
      %v735 = vadd.f32 %v405, %v734
      %v736 = vpop.f32.mrf.mxu0
      %v737 = vadd.f32 %v405, %v736
      %738 = vmatmul.bf16.gmra.mxu0 %v611
      %v739 = vpop.f32.mrf.mxu0
      %v740 = vadd.f32 %v405, %v739
      %v741 = vpop.f32.mrf.mxu0
      %v742 = vadd.f32 %v405, %v741
      %743 = vmatmul.bf16.gmra.mxu0 %v614
      %v744 = vpop.f32.mrf.mxu0
      %v745 = vadd.f32 %v405, %v744
      %v746 = vpop.f32.mrf.mxu0
      %v747 = vadd.f32 %v405, %v746
      %748 = vmatmul.bf16.gmra.mxu0 %v617
      %v749 = vpop.f32.mrf.mxu0
      %v750 = vadd.f32 %v405, %v749
      %v751 = vpop.f32.mrf.mxu0
      %v752 = vadd.f32 %v405, %v751
      %753 = vmatmul.bf16.gmra.mxu0 %v620
      %v754 = vpop.f32.mrf.mxu0
      %v755 = vadd.f32 %v405, %v754
      %v756 = vpop.f32.mrf.mxu0
      %v757 = vadd.f32 %v405, %v756
      %758 = vmatmul.bf16.gmra.mxu0 %v623
      %v759 = vpop.f32.mrf.mxu0
      %v760 = vadd.f32 %v405, %v759
      %v761 = vpop.f32.mrf.mxu0
      %v762 = vadd.f32 %v405, %v761
      %763 = vmatmul.bf16.gmra.mxu0 %v626
      %v764 = vpop.f32.mrf.mxu0
      %v765 = vadd.f32 %v405, %v764
      %v766 = vpop.f32.mrf.mxu0
      %v767 = vadd.f32 %v405, %v766
      %768 = vmatmul.bf16.gmra.mxu0 %v629
      %v769 = vpop.f32.mrf.mxu0
      %v770 = vadd.f32 %v405, %v769
      %v771 = vpop.f32.mrf.mxu0
      %v772 = vadd.f32 %v405, %v771
      %773 = vmatmul.bf16.gmra.mxu0 %v632
      %v774 = vpop.f32.mrf.mxu0
      %v775 = vadd.f32 %v405, %v774
      %v776 = vpop.f32.mrf.mxu0
      %v777 = vadd.f32 %v405, %v776
      %778 = vmatmul.bf16.gmra.mxu0 %v635
      %v779 = vpop.f32.mrf.mxu0
      %v780 = vadd.f32 %v405, %v779
      %v781 = vpop.f32.mrf.mxu0
      %v782 = vadd.f32 %v405, %v781
      %783 = vmatmul.bf16.gmra.mxu0 %v638
      %v784 = vpop.f32.mrf.mxu0
      %v785 = vadd.f32 %v405, %v784
      %v786 = vpop.f32.mrf.mxu0
      %v787 = vadd.f32 %v405, %v786
      %788 = vmatmul.bf16.gmra.mxu0 %v641
      %v789 = vpop.f32.mrf.mxu0
      %v790 = vadd.f32 %v405, %v789
      %v791 = vpop.f32.mrf.mxu0
      %v792 = vadd.f32 %v405, %v791
      %793 = vmatmul.bf16.gmra.mxu0 %v644
      %v794 = vpop.f32.mrf.mxu0
      %v795 = vadd.f32 %v405, %v794
      %v796 = vpop.f32.mrf.mxu0
      %v797 = vadd.f32 %v405, %v796
      %798 = vmatmul.bf16.gmra.mxu0 %v647
      %v799 = vpop.f32.mrf.mxu0
      %v800 = vadd.f32 %v405, %v799
      %v801 = vpop.f32.mrf.mxu0
      %v802 = vadd.f32 %v405, %v801
      %803 = vmatmul.bf16.gmra.mxu0 %v650
      %v804 = vpop.f32.mrf.mxu0
      %v805 = vadd.f32 %v405, %v804
      %v806 = vpop.f32.mrf.mxu0
      %v807 = vadd.f32 %v405, %v806
      %808 = vmatmul.bf16.gmra.mxu0 %v653
      %v809 = vpop.f32.mrf.mxu0
      %v810 = vadd.f32 %v405, %v809
      %v811 = vpop.f32.mrf.mxu0
      %v812 = vadd.f32 %v405, %v811
      %813 = vmatmul.bf16.gmra.mxu0 %v656
      %v814 = vpop.f32.mrf.mxu0
      %v815 = vadd.f32 %v405, %v814
      %v816 = vpop.f32.mrf.mxu0
      %v817 = vadd.f32 %v405, %v816
      %818 = vmatmul.bf16.gmra.mxu0 %v659
      %v819 = vpop.f32.mrf.mxu0
      %v820 = vadd.f32 %v405, %v819
      %v821 = vpop.f32.mrf.mxu0
      %v822 = vadd.f32 %v405, %v821
      %823 = vmatmul.bf16.gmra.mxu0 %v662
      %v824 = vpop.f32.mrf.mxu0
      %v825 = vadd.f32 %v405, %v824
      %v826 = vpop.f32.mrf.mxu0
      %v827 = vadd.f32 %v405, %v826
      %828 = vmatmul.bf16.gmra.mxu0 %v665
      %v829 = vpop.f32.mrf.mxu0
      %v830 = vadd.f32 %v405, %v829
      %v831 = vpop.f32.mrf.mxu0
      %v832 = vadd.f32 %v405, %v831
      %833 = vmatmul.bf16.gmra.mxu0 %v668
      %v834 = vpop.f32.mrf.mxu0
      %v835 = vadd.f32 %v405, %v834
      %v836 = vpop.f32.mrf.mxu0
      %v837 = vadd.f32 %v405, %v836
      %838 = vdwg.mxu0
      %v839 = vtanh.pop %v680
      %v840 = vtanh.pop %v682
      %v841 = vtanh.pop %v685
      %v842 = vtanh.pop %v687
      %v843 = vtanh.pop %v690
      %v844 = vtanh.pop %v692
      %v845 = vtanh.pop %v695
      %v846 = vtanh.pop %v697
      %v847 = vtanh.pop %v700
      %v848 = vtanh.pop %v702
      %v849 = vtanh.pop %v705
      %v850 = vtanh.pop %v707
      %v851 = vtanh.pop %v710
      %v852 = vtanh.pop %v712
      %v853 = vtanh.pop %v715
      %v854 = vtanh.pop %v717
      %v855 = vtanh.pop %v720
      %v856 = vtanh.pop %v722
      %v857 = vtanh.pop %v725
      %v858 = vtanh.pop %v727
      %v859 = vtanh.pop %v730
      %v860 = vtanh.pop %v732
      %v861 = vtanh.pop %v735
      %v862 = vtanh.pop %v737
      %v863 = vtanh.pop %v740
      %v864 = vtanh.pop %v742
      %v865 = vtanh.pop %v745
      %v866 = vtanh.pop %v747
      %v867 = vtanh.pop %v750
      %v868 = vtanh.pop %v752
      %v869 = vtanh.pop %v755
      %v870 = vtanh.pop %v757
      %v871 = vtanh.pop %v760
      %v872 = vtanh.pop %v762
      %v873 = vtanh.pop %v765
      %v874 = vtanh.pop %v767
      %v875 = vtanh.pop %v770
      %v876 = vtanh.pop %v772
      %v877 = vtanh.pop %v775
      %v878 = vtanh.pop %v777
      %v879 = vtanh.pop %v780
      %v880 = vtanh.pop %v782
      %v881 = vtanh.pop %v785
      %v882 = vtanh.pop %v787
      %v883 = vtanh.pop %v790
      %v884 = vtanh.pop %v792
      %v885 = vtanh.pop %v795
      %v886 = vtanh.pop %v797
      %v887 = vtanh.pop %v800
      %v888 = vtanh.pop %v802
      %v889 = vtanh.pop %v805
      %v890 = vtanh.pop %v807
      %v891 = vtanh.pop %v810
      %v892 = vtanh.pop %v812
      %v893 = vtanh.pop %v815
      %v894 = vtanh.pop %v817
      %v895 = vtanh.pop %v820
      %v896 = vtanh.pop %v822
      %v897 = vtanh.pop %v825
      %v898 = vtanh.pop %v827
      %v899 = vtanh.pop %v830
      %v900 = vtanh.pop %v832
      %v901 = vtanh.pop %v835
      %v902 = vtanh.pop %v837
      %v903 = vpack.c.bf16 %v840, %v839
      %v904 = vpack.c.bf16 %v842, %v841
      %v905 = vpack.c.bf16 %v844, %v843
      %v906 = vpack.c.bf16 %v846, %v845
      %v907 = vpack.c.bf16 %v848, %v847
      %v908 = vpack.c.bf16 %v850, %v849
      %v909 = vpack.c.bf16 %v852, %v851
      %v910 = vpack.c.bf16 %v854, %v853
      %v911 = vpack.c.bf16 %v856, %v855
      %v912 = vpack.c.bf16 %v858, %v857
      %v913 = vpack.c.bf16 %v860, %v859
      %v914 = vpack.c.bf16 %v862, %v861
      %v915 = vpack.c.bf16 %v864, %v863
      %v916 = vpack.c.bf16 %v866, %v865
      %v917 = vpack.c.bf16 %v868, %v867
      %v918 = vpack.c.bf16 %v870, %v869
      %v919 = vpack.c.bf16 %v872, %v871
      %v920 = vpack.c.bf16 %v874, %v873
      %v921 = vpack.c.bf16 %v876, %v875
      %v922 = vpack.c.bf16 %v878, %v877
      %v923 = vpack.c.bf16 %v880, %v879
      %v924 = vpack.c.bf16 %v882, %v881
      %v925 = vpack.c.bf16 %v884, %v883
      %v926 = vpack.c.bf16 %v886, %v885
      %v927 = vpack.c.bf16 %v888, %v887
      %v928 = vpack.c.bf16 %v890, %v889
      %v929 = vpack.c.bf16 %v892, %v891
      %v930 = vpack.c.bf16 %v894, %v893
      %v931 = vpack.c.bf16 %v896, %v895
      %v932 = vpack.c.bf16 %v898, %v897
      %v933 = vpack.c.bf16 %v900, %v899
      %v934 = vpack.c.bf16 %v902, %v901
      %v935 = vld [vmem:[%s3] sm:$0xf]
      %v936 = vld [vmem:[%s3 + $0x4] sm:$0xf]
      %v937 = vld [vmem:[%s3 + $0x8] sm:$0xf]
      %v938 = vld [vmem:[%s3 + $0xc] sm:$0xf]
      %v939 = vld [vmem:[%s3 + $0x10] sm:$0xf]
      %v940 = vld [vmem:[%s3 + $0x14] sm:$0xf]
      %v941 = vld [vmem:[%s3 + $0x18] sm:$0xf]
      %v942 = vld [vmem:[%s3 + $0x1c] sm:$0xf]
      %v943 = vld [vmem:[%s3 + $0x20] sm:$0xf]
      %v944 = vld [vmem:[%s3 + $0x24] sm:$0xf]
      %v945 = vld [vmem:[%s3 + $0x28] sm:$0xf]
      %v946 = vld [vmem:[%s3 + $0x2c] sm:$0xf]
      %v947 = vld [vmem:[%s3 + $0x30] sm:$0xf]
      %v948 = vld [vmem:[%s3 + $0x34] sm:$0xf]
      %v949 = vld [vmem:[%s3 + $0x38] sm:$0xf]
      %v950 = vld [vmem:[%s3 + $0x3c] sm:$0xf]
      %v951 = vld [vmem:[%s4] sm:$0x1]
      %v953 = vperm.slane %v951, 0
      %v971 = vunpack.c.l.b16 %v935
      %v972 = vunpack.c.l.b16 %v936
      %v973 = vunpack.c.l.b16 %v937
      %v974 = vunpack.c.l.b16 %v938
      %v975 = vunpack.c.l.b16 %v939
      %v976 = vunpack.c.l.b16 %v940
      %v977 = vunpack.c.l.b16 %v941
      %v978 = vunpack.c.l.b16 %v942
      %v979 = vunpack.c.l.b16 %v943
      %v980 = vunpack.c.l.b16 %v944
      %v981 = vunpack.c.l.b16 %v945
      %v982 = vunpack.c.l.b16 %v946
      %v983 = vunpack.c.l.b16 %v947
      %v984 = vunpack.c.l.b16 %v948
      %v985 = vunpack.c.l.b16 %v949
      %v986 = vunpack.c.l.b16 %v950
      %v987 = vpack.c.b16 %v972, %v971
      %v988 = vpack.c.b16 %v974, %v973
      %v989 = vpack.c.b16 %v976, %v975
      %v990 = vpack.c.b16 %v978, %v977
      %v991 = vpack.c.b16 %v980, %v979
      %v992 = vpack.c.b16 %v982, %v981
      %v993 = vpack.c.b16 %v984, %v983
      %v994 = vpack.c.b16 %v986, %v985
      %1003 = vmatpush.bf16.msra.mxu0 %v994
      %1004 = vmatpush.bf16.msra.mxu0 %v993
      %1005 = vmatpush.bf16.msra.mxu0 %v992
      %1006 = vmatpush.bf16.msra.mxu0 %v991
      %1007 = vmatpush.bf16.msra.mxu0 %v990
      %1008 = vmatpush.bf16.msra.mxu0 %v989
      %1009 = vmatpush.bf16.msra.mxu0 %v988
      %1010 = vmatpush.bf16.msra.mxu0 %v987
      %1011 = vmatmul.bf16.gmra.mxu0 %v903
      %v1012 = vpop.f32.mrf.mxu0
      %v1013 = vadd.f32 %v953, %v1012
      %v1014 = vpop.f32.mrf.mxu0
      %v1015 = vadd.f32 %v953, %v1014
      %1016 = vmatmul.bf16.gmra.mxu0 %v904
      %v1017 = vpop.f32.mrf.mxu0
      %v1018 = vadd.f32 %v953, %v1017
      %v1019 = vpop.f32.mrf.mxu0
      %v1020 = vadd.f32 %v953, %v1019
      %1021 = vmatmul.bf16.gmra.mxu0 %v905
      %v1022 = vpop.f32.mrf.mxu0
      %v1023 = vadd.f32 %v953, %v1022
      %v1024 = vpop.f32.mrf.mxu0
      %v1025 = vadd.f32 %v953, %v1024
      %1026 = vmatmul.bf16.gmra.mxu0 %v906
      %v1027 = vpop.f32.mrf.mxu0
      %v1028 = vadd.f32 %v953, %v1027
      %v1029 = vpop.f32.mrf.mxu0
      %v1030 = vadd.f32 %v953, %v1029
      %1031 = vmatmul.bf16.gmra.mxu0 %v907
      %v1032 = vpop.f32.mrf.mxu0
      %v1033 = vadd.f32 %v953, %v1032
      %v1034 = vpop.f32.mrf.mxu0
      %v1035 = vadd.f32 %v953, %v1034
      %1036 = vmatmul.bf16.gmra.mxu0 %v908
      %v1037 = vpop.f32.mrf.mxu0
      %v1038 = vadd.f32 %v953, %v1037
      %v1039 = vpop.f32.mrf.mxu0
      %v1040 = vadd.f32 %v953, %v1039
      %1041 = vmatmul.bf16.gmra.mxu0 %v909
      %v1042 = vpop.f32.mrf.mxu0
      %v1043 = vadd.f32 %v953, %v1042
      %v1044 = vpop.f32.mrf.mxu0
      %v1045 = vadd.f32 %v953, %v1044
      %1046 = vmatmul.bf16.gmra.mxu0 %v910
      %v1047 = vpop.f32.mrf.mxu0
      %v1048 = vadd.f32 %v953, %v1047
      %v1049 = vpop.f32.mrf.mxu0
      %v1050 = vadd.f32 %v953, %v1049
      %1051 = vmatmul.bf16.gmra.mxu0 %v911
      %v1052 = vpop.f32.mrf.mxu0
      %v1053 = vadd.f32 %v953, %v1052
      %v1054 = vpop.f32.mrf.mxu0
      %v1055 = vadd.f32 %v953, %v1054
      %1056 = vmatmul.bf16.gmra.mxu0 %v912
      %v1057 = vpop.f32.mrf.mxu0
      %v1058 = vadd.f32 %v953, %v1057
      %v1059 = vpop.f32.mrf.mxu0
      %v1060 = vadd.f32 %v953, %v1059
      %1061 = vmatmul.bf16.gmra.mxu0 %v913
      %v1062 = vpop.f32.mrf.mxu0
      %v1063 = vadd.f32 %v953, %v1062
      %v1064 = vpop.f32.mrf.mxu0
      %v1065 = vadd.f32 %v953, %v1064
      %1066 = vmatmul.bf16.gmra.mxu0 %v914
      %v1067 = vpop.f32.mrf.mxu0
      %v1068 = vadd.f32 %v953, %v1067
      %v1069 = vpop.f32.mrf.mxu0
      %v1070 = vadd.f32 %v953, %v1069
      %1071 = vmatmul.bf16.gmra.mxu0 %v915
      %v1072 = vpop.f32.mrf.mxu0
      %v1073 = vadd.f32 %v953, %v1072
      %v1074 = vpop.f32.mrf.mxu0
      %v1075 = vadd.f32 %v953, %v1074
      %1076 = vmatmul.bf16.gmra.mxu0 %v916
      %v1077 = vpop.f32.mrf.mxu0
      %v1078 = vadd.f32 %v953, %v1077
      %v1079 = vpop.f32.mrf.mxu0
      %v1080 = vadd.f32 %v953, %v1079
      %1081 = vmatmul.bf16.gmra.mxu0 %v917
      %v1082 = vpop.f32.mrf.mxu0
      %v1083 = vadd.f32 %v953, %v1082
      %v1084 = vpop.f32.mrf.mxu0
      %v1085 = vadd.f32 %v953, %v1084
      %1086 = vmatmul.bf16.gmra.mxu0 %v918
      %v1087 = vpop.f32.mrf.mxu0
      %v1088 = vadd.f32 %v953, %v1087
      %v1089 = vpop.f32.mrf.mxu0
      %v1090 = vadd.f32 %v953, %v1089
      %1091 = vmatmul.bf16.gmra.mxu0 %v919
      %v1092 = vpop.f32.mrf.mxu0
      %v1093 = vadd.f32 %v953, %v1092
      %v1094 = vpop.f32.mrf.mxu0
      %v1095 = vadd.f32 %v953, %v1094
      %1096 = vmatmul.bf16.gmra.mxu0 %v920
      %v1097 = vpop.f32.mrf.mxu0
      %v1098 = vadd.f32 %v953, %v1097
      %v1099 = vpop.f32.mrf.mxu0
      %v1100 = vadd.f32 %v953, %v1099
      %1101 = vmatmul.bf16.gmra.mxu0 %v921
      %v1102 = vpop.f32.mrf.mxu0
      %v1103 = vadd.f32 %v953, %v1102
      %v1104 = vpop.f32.mrf.mxu0
      %v1105 = vadd.f32 %v953, %v1104
      %1106 = vmatmul.bf16.gmra.mxu0 %v922
      %v1107 = vpop.f32.mrf.mxu0
      %v1108 = vadd.f32 %v953, %v1107
      %v1109 = vpop.f32.mrf.mxu0
      %v1110 = vadd.f32 %v953, %v1109
      %1111 = vmatmul.bf16.gmra.mxu0 %v923
      %v1112 = vpop.f32.mrf.mxu0
      %v1113 = vadd.f32 %v953, %v1112
      %v1114 = vpop.f32.mrf.mxu0
      %v1115 = vadd.f32 %v953, %v1114
      %1116 = vmatmul.bf16.gmra.mxu0 %v924
      %v1117 = vpop.f32.mrf.mxu0
      %v1118 = vadd.f32 %v953, %v1117
      %v1119 = vpop.f32.mrf.mxu0
      %v1120 = vadd.f32 %v953, %v1119
      %1121 = vmatmul.bf16.gmra.mxu0 %v925
      %v1122 = vpop.f32.mrf.mxu0
      %v1123 = vadd.f32 %v953, %v1122
      %v1124 = vpop.f32.mrf.mxu0
      %v1125 = vadd.f32 %v953, %v1124
      %1126 = vmatmul.bf16.gmra.mxu0 %v926
      %v1127 = vpop.f32.mrf.mxu0
      %v1128 = vadd.f32 %v953, %v1127
      %v1129 = vpop.f32.mrf.mxu0
      %v1130 = vadd.f32 %v953, %v1129
      %1131 = vmatmul.bf16.gmra.mxu0 %v927
      %v1132 = vpop.f32.mrf.mxu0
      %v1133 = vadd.f32 %v953, %v1132
      %v1134 = vpop.f32.mrf.mxu0
      %v1135 = vadd.f32 %v953, %v1134
      %1136 = vmatmul.bf16.gmra.mxu0 %v928
      %v1137 = vpop.f32.mrf.mxu0
      %v1138 = vadd.f32 %v953, %v1137
      %v1139 = vpop.f32.mrf.mxu0
      %v1140 = vadd.f32 %v953, %v1139
      %1141 = vmatmul.bf16.gmra.mxu0 %v929
      %v1142 = vpop.f32.mrf.mxu0
      %v1143 = vadd.f32 %v953, %v1142
      %v1144 = vpop.f32.mrf.mxu0
      %v1145 = vadd.f32 %v953, %v1144
      %1146 = vmatmul.bf16.gmra.mxu0 %v930
      %v1147 = vpop.f32.mrf.mxu0
      %v1148 = vadd.f32 %v953, %v1147
      %v1149 = vpop.f32.mrf.mxu0
      %v1150 = vadd.f32 %v953, %v1149
      %1151 = vmatmul.bf16.gmra.mxu0 %v931
      %v1152 = vpop.f32.mrf.mxu0
      %v1153 = vadd.f32 %v953, %v1152
      %v1154 = vpop.f32.mrf.mxu0
      %v1155 = vadd.f32 %v953, %v1154
      %1156 = vmatmul.bf16.gmra.mxu0 %v932
      %v1157 = vpop.f32.mrf.mxu0
      %v1158 = vadd.f32 %v953, %v1157
      %v1159 = vpop.f32.mrf.mxu0
      %v1160 = vadd.f32 %v953, %v1159
      %1161 = vmatmul.bf16.gmra.mxu0 %v933
      %v1162 = vpop.f32.mrf.mxu0
      %v1163 = vadd.f32 %v953, %v1162
      %v1164 = vpop.f32.mrf.mxu0
      %v1165 = vadd.f32 %v953, %v1164
      %1166 = vmatmul.bf16.gmra.mxu0 %v934
      %v1167 = vpop.f32.mrf.mxu0
      %v1168 = vadd.f32 %v953, %v1167
      %v1169 = vpop.f32.mrf.mxu0
      %v1170 = vadd.f32 %v953, %v1169
      %1171 = vdwg.mxu0
      %v1172 = vtanh.pop %v1013
      %v1173 = vtanh.pop %v1015
      %v1174 = vtanh.pop %v1018
      %v1175 = vtanh.pop %v1020
      %v1176 = vtanh.pop %v1023
      %v1177 = vtanh.pop %v1025
      %v1178 = vtanh.pop %v1028
      %v1179 = vtanh.pop %v1030
      %v1180 = vtanh.pop %v1033
      %v1181 = vtanh.pop %v1035
      %v1182 = vtanh.pop %v1038
      %v1183 = vtanh.pop %v1040
      %v1184 = vtanh.pop %v1043
      %v1185 = vtanh.pop %v1045
      %v1186 = vtanh.pop %v1048
      %v1187 = vtanh.pop %v1050
      %v1188 = vtanh.pop %v1053
      %v1189 = vtanh.pop %v1055
      %v1190 = vtanh.pop %v1058
      %v1191 = vtanh.pop %v1060
      %v1192 = vtanh.pop %v1063
      %v1193 = vtanh.pop %v1065
      %v1194 = vtanh.pop %v1068
      %v1195 = vtanh.pop %v1070
      %v1196 = vtanh.pop %v1073
      %v1197 = vtanh.pop %v1075
      %v1198 = vtanh.pop %v1078
      %v1199 = vtanh.pop %v1080
      %v1200 = vtanh.pop %v1083
      %v1201 = vtanh.pop %v1085
      %v1202 = vtanh.pop %v1088
      %v1203 = vtanh.pop %v1090
      %v1204 = vtanh.pop %v1093
      %v1205 = vtanh.pop %v1095
      %v1206 = vtanh.pop %v1098
      %v1207 = vtanh.pop %v1100
      %v1208 = vtanh.pop %v1103
      %v1209 = vtanh.pop %v1105
      %v1210 = vtanh.pop %v1108
      %v1211 = vtanh.pop %v1110
      %v1212 = vtanh.pop %v1113
      %v1213 = vtanh.pop %v1115
      %v1214 = vtanh.pop %v1118
      %v1215 = vtanh.pop %v1120
      %v1216 = vtanh.pop %v1123
      %v1217 = vtanh.pop %v1125
      %v1218 = vtanh.pop %v1128
      %v1219 = vtanh.pop %v1130
      %v1220 = vtanh.pop %v1133
      %v1221 = vtanh.pop %v1135
      %v1222 = vtanh.pop %v1138
      %v1223 = vtanh.pop %v1140
      %v1224 = vtanh.pop %v1143
      %v1225 = vtanh.pop %v1145
      %v1226 = vtanh.pop %v1148
      %v1227 = vtanh.pop %v1150
      %v1228 = vtanh.pop %v1153
      %v1229 = vtanh.pop %v1155
      %v1230 = vtanh.pop %v1158
      %v1231 = vtanh.pop %v1160
      %v1232 = vtanh.pop %v1163
      %v1233 = vtanh.pop %v1165
      %v1234 = vtanh.pop %v1168
      %v1235 = vtanh.pop %v1170
      %v1236 = vpack.c.bf16 %v1173, %v1172
      %v1237 = vpack.c.bf16 %v1175, %v1174
      %v1238 = vpack.c.bf16 %v1177, %v1176
      %v1239 = vpack.c.bf16 %v1179, %v1178
      %v1240 = vpack.c.bf16 %v1181, %v1180
      %v1241 = vpack.c.bf16 %v1183, %v1182
      %v1242 = vpack.c.bf16 %v1185, %v1184
      %v1243 = vpack.c.bf16 %v1187, %v1186
      %v1244 = vpack.c.bf16 %v1189, %v1188
      %v1245 = vpack.c.bf16 %v1191, %v1190
      %v1246 = vpack.c.bf16 %v1193, %v1192
      %v1247 = vpack.c.bf16 %v1195, %v1194
      %v1248 = vpack.c.bf16 %v1197, %v1196
      %v1249 = vpack.c.bf16 %v1199, %v1198
      %v1250 = vpack.c.bf16 %v1201, %v1200
      %v1251 = vpack.c.bf16 %v1203, %v1202
      %v1252 = vpack.c.bf16 %v1205, %v1204
      %v1253 = vpack.c.bf16 %v1207, %v1206
      %v1254 = vpack.c.bf16 %v1209, %v1208
      %v1255 = vpack.c.bf16 %v1211, %v1210
      %v1256 = vpack.c.bf16 %v1213, %v1212
      %v1257 = vpack.c.bf16 %v1215, %v1214
      %v1258 = vpack.c.bf16 %v1217, %v1216
      %v1259 = vpack.c.bf16 %v1219, %v1218
      %v1260 = vpack.c.bf16 %v1221, %v1220
      %v1261 = vpack.c.bf16 %v1223, %v1222
      %v1262 = vpack.c.bf16 %v1225, %v1224
      %v1263 = vpack.c.bf16 %v1227, %v1226
      %v1264 = vpack.c.bf16 %v1229, %v1228
      %v1265 = vpack.c.bf16 %v1231, %v1230
      %v1266 = vpack.c.bf16 %v1233, %v1232
      %v1267 = vpack.c.bf16 %v1235, %v1234
      %v1268 = vld [vmem:[%s5] sm:$0xf]
      %v1269 = vld [vmem:[%s5 + $0x4] sm:$0xf]
      %v1270 = vld [vmem:[%s5 + $0x8] sm:$0xf]
      %v1271 = vld [vmem:[%s5 + $0xc] sm:$0xf]
      %v1272 = vld [vmem:[%s5 + $0x10] sm:$0xf]
      %v1273 = vld [vmem:[%s5 + $0x14] sm:$0xf]
      %v1274 = vld [vmem:[%s5 + $0x18] sm:$0xf]
      %v1275 = vld [vmem:[%s5 + $0x1c] sm:$0xf]
      %v1276 = vld [vmem:[%s5 + $0x20] sm:$0xf]
      %v1277 = vld [vmem:[%s5 + $0x24] sm:$0xf]
      %v1278 = vld [vmem:[%s5 + $0x28] sm:$0xf]
      %v1279 = vld [vmem:[%s5 + $0x2c] sm:$0xf]
      %v1280 = vld [vmem:[%s5 + $0x30] sm:$0xf]
      %v1281 = vld [vmem:[%s5 + $0x34] sm:$0xf]
      %v1282 = vld [vmem:[%s5 + $0x38] sm:$0xf]
      %v1283 = vld [vmem:[%s5 + $0x3c] sm:$0xf]
      %v1284 = vld [vmem:[%s6] sm:$0x1]
      %v1286 = vperm.slane %v1284, 0
      %v1304 = vunpack.c.l.b16 %v1268
      %v1305 = vunpack.c.l.b16 %v1269
      %v1306 = vunpack.c.l.b16 %v1270
      %v1307 = vunpack.c.l.b16 %v1271
      %v1308 = vunpack.c.l.b16 %v1272
      %v1309 = vunpack.c.l.b16 %v1273
      %v1310 = vunpack.c.l.b16 %v1274
      %v1311 = vunpack.c.l.b16 %v1275
      %v1312 = vunpack.c.l.b16 %v1276
      %v1313 = vunpack.c.l.b16 %v1277
      %v1314 = vunpack.c.l.b16 %v1278
      %v1315 = vunpack.c.l.b16 %v1279
      %v1316 = vunpack.c.l.b16 %v1280
      %v1317 = vunpack.c.l.b16 %v1281
      %v1318 = vunpack.c.l.b16 %v1282
      %v1319 = vunpack.c.l.b16 %v1283
      %v1320 = vpack.c.b16 %v1305, %v1304
      %v1321 = vpack.c.b16 %v1307, %v1306
      %v1322 = vpack.c.b16 %v1309, %v1308
      %v1323 = vpack.c.b16 %v1311, %v1310
      %v1324 = vpack.c.b16 %v1313, %v1312
      %v1325 = vpack.c.b16 %v1315, %v1314
      %v1326 = vpack.c.b16 %v1317, %v1316
      %v1327 = vpack.c.b16 %v1319, %v1318
      %1336 = vmatpush.bf16.msra.mxu0 %v1327
      %1337 = vmatpush.bf16.msra.mxu0 %v1326
      %1338 = vmatpush.bf16.msra.mxu0 %v1325
      %1339 = vmatpush.bf16.msra.mxu0 %v1324
      %1340 = vmatpush.bf16.msra.mxu0 %v1323
      %1341 = vmatpush.bf16.msra.mxu0 %v1322
      %1342 = vmatpush.bf16.msra.mxu0 %v1321
      %1343 = vmatpush.bf16.msra.mxu0 %v1320
      %1344 = vmatmul.bf16.gmra.mxu0 %v1236
      %v1345 = vpop.f32.mrf.mxu0
      %v1346 = vadd.f32 %v1286, %v1345
      %v1347 = vpop.f32.mrf.mxu0
      %v1348 = vadd.f32 %v1286, %v1347
      %1349 = vmatmul.bf16.gmra.mxu0 %v1237
      %v1350 = vpop.f32.mrf.mxu0
      %v1351 = vadd.f32 %v1286, %v1350
      %v1352 = vpop.f32.mrf.mxu0
      %v1353 = vadd.f32 %v1286, %v1352
      %1354 = vmatmul.bf16.gmra.mxu0 %v1238
      %v1355 = vpop.f32.mrf.mxu0
      %v1356 = vadd.f32 %v1286, %v1355
      %v1357 = vpop.f32.mrf.mxu0
      %v1358 = vadd.f32 %v1286, %v1357
      %1359 = vmatmul.bf16.gmra.mxu0 %v1239
      %v1360 = vpop.f32.mrf.mxu0
      %v1361 = vadd.f32 %v1286, %v1360
      %v1362 = vpop.f32.mrf.mxu0
      %v1363 = vadd.f32 %v1286, %v1362
      %1364 = vmatmul.bf16.gmra.mxu0 %v1240
      %v1365 = vpop.f32.mrf.mxu0
      %v1366 = vadd.f32 %v1286, %v1365
      %v1367 = vpop.f32.mrf.mxu0
      %v1368 = vadd.f32 %v1286, %v1367
      %1369 = vmatmul.bf16.gmra.mxu0 %v1241
      %v1370 = vpop.f32.mrf.mxu0
      %v1371 = vadd.f32 %v1286, %v1370
      %v1372 = vpop.f32.mrf.mxu0
      %v1373 = vadd.f32 %v1286, %v1372
      %1374 = vmatmul.bf16.gmra.mxu0 %v1242
      %v1375 = vpop.f32.mrf.mxu0
      %v1376 = vadd.f32 %v1286, %v1375
      %v1377 = vpop.f32.mrf.mxu0
      %v1378 = vadd.f32 %v1286, %v1377
      %1379 = vmatmul.bf16.gmra.mxu0 %v1243
      %v1380 = vpop.f32.mrf.mxu0
      %v1381 = vadd.f32 %v1286, %v1380
      %v1382 = vpop.f32.mrf.mxu0
      %v1383 = vadd.f32 %v1286, %v1382
      %1384 = vmatmul.bf16.gmra.mxu0 %v1244
      %v1385 = vpop.f32.mrf.mxu0
      %v1386 = vadd.f32 %v1286, %v1385
      %v1387 = vpop.f32.mrf.mxu0
      %v1388 = vadd.f32 %v1286, %v1387
      %1389 = vmatmul.bf16.gmra.mxu0 %v1245
      %v1390 = vpop.f32.mrf.mxu0
      %v1391 = vadd.f32 %v1286, %v1390
      %v1392 = vpop.f32.mrf.mxu0
      %v1393 = vadd.f32 %v1286, %v1392
      %1394 = vmatmul.bf16.gmra.mxu0 %v1246
      %v1395 = vpop.f32.mrf.mxu0
      %v1396 = vadd.f32 %v1286, %v1395
      %v1397 = vpop.f32.mrf.mxu0
      %v1398 = vadd.f32 %v1286, %v1397
      %1399 = vmatmul.bf16.gmra.mxu0 %v1247
      %v1400 = vpop.f32.mrf.mxu0
      %v1401 = vadd.f32 %v1286, %v1400
      %v1402 = vpop.f32.mrf.mxu0
      %v1403 = vadd.f32 %v1286, %v1402
      %1404 = vmatmul.bf16.gmra.mxu0 %v1248
      %v1405 = vpop.f32.mrf.mxu0
      %v1406 = vadd.f32 %v1286, %v1405
      %v1407 = vpop.f32.mrf.mxu0
      %v1408 = vadd.f32 %v1286, %v1407
      %1409 = vmatmul.bf16.gmra.mxu0 %v1249
      %v1410 = vpop.f32.mrf.mxu0
      %v1411 = vadd.f32 %v1286, %v1410
      %v1412 = vpop.f32.mrf.mxu0
      %v1413 = vadd.f32 %v1286, %v1412
      %1414 = vmatmul.bf16.gmra.mxu0 %v1250
      %v1415 = vpop.f32.mrf.mxu0
      %v1416 = vadd.f32 %v1286, %v1415
      %v1417 = vpop.f32.mrf.mxu0
      %v1418 = vadd.f32 %v1286, %v1417
      %1419 = vmatmul.bf16.gmra.mxu0 %v1251
      %v1420 = vpop.f32.mrf.mxu0
      %v1421 = vadd.f32 %v1286, %v1420
      %v1422 = vpop.f32.mrf.mxu0
      %v1423 = vadd.f32 %v1286, %v1422
      %1424 = vmatmul.bf16.gmra.mxu0 %v1252
      %v1425 = vpop.f32.mrf.mxu0
      %v1426 = vadd.f32 %v1286, %v1425
      %v1427 = vpop.f32.mrf.mxu0
      %v1428 = vadd.f32 %v1286, %v1427
      %1429 = vmatmul.bf16.gmra.mxu0 %v1253
      %v1430 = vpop.f32.mrf.mxu0
      %v1431 = vadd.f32 %v1286, %v1430
      %v1432 = vpop.f32.mrf.mxu0
      %v1433 = vadd.f32 %v1286, %v1432
      %1434 = vmatmul.bf16.gmra.mxu0 %v1254
      %v1435 = vpop.f32.mrf.mxu0
      %v1436 = vadd.f32 %v1286, %v1435
      %v1437 = vpop.f32.mrf.mxu0
      %v1438 = vadd.f32 %v1286, %v1437
      %1439 = vmatmul.bf16.gmra.mxu0 %v1255
      %v1440 = vpop.f32.mrf.mxu0
      %v1441 = vadd.f32 %v1286, %v1440
      %v1442 = vpop.f32.mrf.mxu0
      %v1443 = vadd.f32 %v1286, %v1442
      %1444 = vmatmul.bf16.gmra.mxu0 %v1256
      %v1445 = vpop.f32.mrf.mxu0
      %v1446 = vadd.f32 %v1286, %v1445
      %v1447 = vpop.f32.mrf.mxu0
      %v1448 = vadd.f32 %v1286, %v1447
      %1449 = vmatmul.bf16.gmra.mxu0 %v1257
      %v1450 = vpop.f32.mrf.mxu0
      %v1451 = vadd.f32 %v1286, %v1450
      %v1452 = vpop.f32.mrf.mxu0
      %v1453 = vadd.f32 %v1286, %v1452
      %1454 = vmatmul.bf16.gmra.mxu0 %v1258
      %v1455 = vpop.f32.mrf.mxu0
      %v1456 = vadd.f32 %v1286, %v1455
      %v1457 = vpop.f32.mrf.mxu0
      %v1458 = vadd.f32 %v1286, %v1457
      %1459 = vmatmul.bf16.gmra.mxu0 %v1259
      %v1460 = vpop.f32.mrf.mxu0
      %v1461 = vadd.f32 %v1286, %v1460
      %v1462 = vpop.f32.mrf.mxu0
      %v1463 = vadd.f32 %v1286, %v1462
      %1464 = vmatmul.bf16.gmra.mxu0 %v1260
      %v1465 = vpop.f32.mrf.mxu0
      %v1466 = vadd.f32 %v1286, %v1465
      %v1467 = vpop.f32.mrf.mxu0
      %v1468 = vadd.f32 %v1286, %v1467
      %1469 = vmatmul.bf16.gmra.mxu0 %v1261
      %v1470 = vpop.f32.mrf.mxu0
      %v1471 = vadd.f32 %v1286, %v1470
      %v1472 = vpop.f32.mrf.mxu0
      %v1473 = vadd.f32 %v1286, %v1472
      %1474 = vmatmul.bf16.gmra.mxu0 %v1262
      %v1475 = vpop.f32.mrf.mxu0
      %v1476 = vadd.f32 %v1286, %v1475
      %v1477 = vpop.f32.mrf.mxu0
      %v1478 = vadd.f32 %v1286, %v1477
      %1479 = vmatmul.bf16.gmra.mxu0 %v1263
      %v1480 = vpop.f32.mrf.mxu0
      %v1481 = vadd.f32 %v1286, %v1480
      %v1482 = vpop.f32.mrf.mxu0
      %v1483 = vadd.f32 %v1286, %v1482
      %1484 = vmatmul.bf16.gmra.mxu0 %v1264
      %v1485 = vpop.f32.mrf.mxu0
      %v1486 = vadd.f32 %v1286, %v1485
      %v1487 = vpop.f32.mrf.mxu0
      %v1488 = vadd.f32 %v1286, %v1487
      %1489 = vmatmul.bf16.gmra.mxu0 %v1265
      %v1490 = vpop.f32.mrf.mxu0
      %v1491 = vadd.f32 %v1286, %v1490
      %v1492 = vpop.f32.mrf.mxu0
      %v1493 = vadd.f32 %v1286, %v1492
      %1494 = vmatmul.bf16.gmra.mxu0 %v1266
      %v1495 = vpop.f32.mrf.mxu0
      %v1496 = vadd.f32 %v1286, %v1495
      %v1497 = vpop.f32.mrf.mxu0
      %v1498 = vadd.f32 %v1286, %v1497
      %1499 = vmatmul.bf16.gmra.mxu0 %v1267
      %v1500 = vpop.f32.mrf.mxu0
      %v1501 = vadd.f32 %v1286, %v1500
      %v1502 = vpop.f32.mrf.mxu0
      %v1503 = vadd.f32 %v1286, %v1502
      %1504 = vdwg.mxu0
      %v1505 = vtanh.pop %v1346
      %v1506 = vtanh.pop %v1348
      %v1507 = vtanh.pop %v1351
      %v1508 = vtanh.pop %v1353
      %v1509 = vtanh.pop %v1356
      %v1510 = vtanh.pop %v1358
      %v1511 = vtanh.pop %v1361
      %v1512 = vtanh.pop %v1363
      %v1513 = vtanh.pop %v1366
      %v1514 = vtanh.pop %v1368
      %v1515 = vtanh.pop %v1371
      %v1516 = vtanh.pop %v1373
      %v1517 = vtanh.pop %v1376
      %v1518 = vtanh.pop %v1378
      %v1519 = vtanh.pop %v1381
      %v1520 = vtanh.pop %v1383
      %v1521 = vtanh.pop %v1386
      %v1522 = vtanh.pop %v1388
      %v1523 = vtanh.pop %v1391
      %v1524 = vtanh.pop %v1393
      %v1525 = vtanh.pop %v1396
      %v1526 = vtanh.pop %v1398
      %v1527 = vtanh.pop %v1401
      %v1528 = vtanh.pop %v1403
      %v1529 = vtanh.pop %v1406
      %v1530 = vtanh.pop %v1408
      %v1531 = vtanh.pop %v1411
      %v1532 = vtanh.pop %v1413
      %v1533 = vtanh.pop %v1416
      %v1534 = vtanh.pop %v1418
      %v1535 = vtanh.pop %v1421
      %v1536 = vtanh.pop %v1423
      %v1537 = vtanh.pop %v1426
      %v1538 = vtanh.pop %v1428
      %v1539 = vtanh.pop %v1431
      %v1540 = vtanh.pop %v1433
      %v1541 = vtanh.pop %v1436
      %v1542 = vtanh.pop %v1438
      %v1543 = vtanh.pop %v1441
      %v1544 = vtanh.pop %v1443
      %v1545 = vtanh.pop %v1446
      %v1546 = vtanh.pop %v1448
      %v1547 = vtanh.pop %v1451
      %v1548 = vtanh.pop %v1453
      %v1549 = vtanh.pop %v1456
      %v1550 = vtanh.pop %v1458
      %v1551 = vtanh.pop %v1461
      %v1552 = vtanh.pop %v1463
      %v1553 = vtanh.pop %v1466
      %v1554 = vtanh.pop %v1468
      %v1555 = vtanh.pop %v1471
      %v1556 = vtanh.pop %v1473
      %v1557 = vtanh.pop %v1476
      %v1558 = vtanh.pop %v1478
      %v1559 = vtanh.pop %v1481
      %v1560 = vtanh.pop %v1483
      %v1561 = vtanh.pop %v1486
      %v1562 = vtanh.pop %v1488
      %v1563 = vtanh.pop %v1491
      %v1564 = vtanh.pop %v1493
      %v1565 = vtanh.pop %v1496
      %v1566 = vtanh.pop %v1498
      %v1567 = vtanh.pop %v1501
      %v1568 = vtanh.pop %v1503
      %v1569 = vpack.c.bf16 %v1506, %v1505
      %v1570 = vpack.c.bf16 %v1508, %v1507
      %v1571 = vpack.c.bf16 %v1510, %v1509
      %v1572 = vpack.c.bf16 %v1512, %v1511
      %v1573 = vpack.c.bf16 %v1514, %v1513
      %v1574 = vpack.c.bf16 %v1516, %v1515
      %v1575 = vpack.c.bf16 %v1518, %v1517
      %v1576 = vpack.c.bf16 %v1520, %v1519
      %v1577 = vpack.c.bf16 %v1522, %v1521
      %v1578 = vpack.c.bf16 %v1524, %v1523
      %v1579 = vpack.c.bf16 %v1526, %v1525
      %v1580 = vpack.c.bf16 %v1528, %v1527
      %v1581 = vpack.c.bf16 %v1530, %v1529
      %v1582 = vpack.c.bf16 %v1532, %v1531
      %v1583 = vpack.c.bf16 %v1534, %v1533
      %v1584 = vpack.c.bf16 %v1536, %v1535
      %v1585 = vpack.c.bf16 %v1538, %v1537
      %v1586 = vpack.c.bf16 %v1540, %v1539
      %v1587 = vpack.c.bf16 %v1542, %v1541
      %v1588 = vpack.c.bf16 %v1544, %v1543
      %v1589 = vpack.c.bf16 %v1546, %v1545
      %v1590 = vpack.c.bf16 %v1548, %v1547
      %v1591 = vpack.c.bf16 %v1550, %v1549
      %v1592 = vpack.c.bf16 %v1552, %v1551
      %v1593 = vpack.c.bf16 %v1554, %v1553
      %v1594 = vpack.c.bf16 %v1556, %v1555
      %v1595 = vpack.c.bf16 %v1558, %v1557
      %v1596 = vpack.c.bf16 %v1560, %v1559
      %v1597 = vpack.c.bf16 %v1562, %v1561
      %v1598 = vpack.c.bf16 %v1564, %v1563
      %v1599 = vpack.c.bf16 %v1566, %v1565
      %v1600 = vpack.c.bf16 %v1568, %v1567
      %v1601 = vld [vmem:[%s7] sm:$0xf]
      %v1602 = vld [vmem:[%s7 + $0x4] sm:$0xf]
      %v1603 = vld [vmem:[%s7 + $0x8] sm:$0xf]
      %v1604 = vld [vmem:[%s7 + $0xc] sm:$0xf]
      %v1605 = vld [vmem:[%s7 + $0x10] sm:$0xf]
      %v1606 = vld [vmem:[%s7 + $0x14] sm:$0xf]
      %v1607 = vld [vmem:[%s7 + $0x18] sm:$0xf]
      %v1608 = vld [vmem:[%s7 + $0x1c] sm:$0xf]
      %v1609 = vld [vmem:[%s7 + $0x20] sm:$0xf]
      %v1610 = vld [vmem:[%s7 + $0x24] sm:$0xf]
      %v1611 = vld [vmem:[%s7 + $0x28] sm:$0xf]
      %v1612 = vld [vmem:[%s7 + $0x2c] sm:$0xf]
      %v1613 = vld [vmem:[%s7 + $0x30] sm:$0xf]
      %v1614 = vld [vmem:[%s7 + $0x34] sm:$0xf]
      %v1615 = vld [vmem:[%s7 + $0x38] sm:$0xf]
      %v1616 = vld [vmem:[%s7 + $0x3c] sm:$0xf]
      %v1617 = vld [vmem:[%s8] sm:$0x1]
      %v1619 = vperm.slane %v1617, 0
      %v1637 = vunpack.c.l.b16 %v1601
      %v1638 = vunpack.c.l.b16 %v1602
      %v1639 = vunpack.c.l.b16 %v1603
      %v1640 = vunpack.c.l.b16 %v1604
      %v1641 = vunpack.c.l.b16 %v1605
      %v1642 = vunpack.c.l.b16 %v1606
      %v1643 = vunpack.c.l.b16 %v1607
      %v1644 = vunpack.c.l.b16 %v1608
      %v1645 = vunpack.c.l.b16 %v1609
      %v1646 = vunpack.c.l.b16 %v1610
      %v1647 = vunpack.c.l.b16 %v1611
      %v1648 = vunpack.c.l.b16 %v1612
      %v1649 = vunpack.c.l.b16 %v1613
      %v1650 = vunpack.c.l.b16 %v1614
      %v1651 = vunpack.c.l.b16 %v1615
      %v1652 = vunpack.c.l.b16 %v1616
      %v1653 = vpack.c.b16 %v1638, %v1637
      %v1654 = vpack.c.b16 %v1640, %v1639
      %v1655 = vpack.c.b16 %v1642, %v1641
      %v1656 = vpack.c.b16 %v1644, %v1643
      %v1657 = vpack.c.b16 %v1646, %v1645
      %v1658 = vpack.c.b16 %v1648, %v1647
      %v1659 = vpack.c.b16 %v1650, %v1649
      %v1660 = vpack.c.b16 %v1652, %v1651
      %1669 = vmatpush.bf16.msra.mxu0 %v1660
      %1670 = vmatpush.bf16.msra.mxu0 %v1659
      %1671 = vmatpush.bf16.msra.mxu0 %v1658
      %1672 = vmatpush.bf16.msra.mxu0 %v1657
      %1673 = vmatpush.bf16.msra.mxu0 %v1656
      %1674 = vmatpush.bf16.msra.mxu0 %v1655
      %1675 = vmatpush.bf16.msra.mxu0 %v1654
      %1676 = vmatpush.bf16.msra.mxu0 %v1653
      %1677 = vmatmul.bf16.gmra.mxu0 %v1569
      %v1678 = vpop.f32.mrf.mxu0
      %v1679 = vadd.f32 %v1619, %v1678
      %v1680 = vpop.f32.mrf.mxu0
      %v1681 = vadd.f32 %v1619, %v1680
      %1682 = vmatmul.bf16.gmra.mxu0 %v1570
      %v1683 = vpop.f32.mrf.mxu0
      %v1684 = vadd.f32 %v1619, %v1683
      %v1685 = vpop.f32.mrf.mxu0
      %v1686 = vadd.f32 %v1619, %v1685
      %1687 = vmatmul.bf16.gmra.mxu0 %v1571
      %v1688 = vpop.f32.mrf.mxu0
      %v1689 = vadd.f32 %v1619, %v1688
      %v1690 = vpop.f32.mrf.mxu0
      %v1691 = vadd.f32 %v1619, %v1690
      %1692 = vmatmul.bf16.gmra.mxu0 %v1572
      %v1693 = vpop.f32.mrf.mxu0
      %v1694 = vadd.f32 %v1619, %v1693
      %v1695 = vpop.f32.mrf.mxu0
      %v1696 = vadd.f32 %v1619, %v1695
      %1697 = vmatmul.bf16.gmra.mxu0 %v1573
      %v1698 = vpop.f32.mrf.mxu0
      %v1699 = vadd.f32 %v1619, %v1698
      %v1700 = vpop.f32.mrf.mxu0
      %v1701 = vadd.f32 %v1619, %v1700
      %1702 = vmatmul.bf16.gmra.mxu0 %v1574
      %v1703 = vpop.f32.mrf.mxu0
      %v1704 = vadd.f32 %v1619, %v1703
      %v1705 = vpop.f32.mrf.mxu0
      %v1706 = vadd.f32 %v1619, %v1705
      %1707 = vmatmul.bf16.gmra.mxu0 %v1575
      %v1708 = vpop.f32.mrf.mxu0
      %v1709 = vadd.f32 %v1619, %v1708
      %v1710 = vpop.f32.mrf.mxu0
      %v1711 = vadd.f32 %v1619, %v1710
      %1712 = vmatmul.bf16.gmra.mxu0 %v1576
      %v1713 = vpop.f32.mrf.mxu0
      %v1714 = vadd.f32 %v1619, %v1713
      %v1715 = vpop.f32.mrf.mxu0
      %v1716 = vadd.f32 %v1619, %v1715
      %1717 = vmatmul.bf16.gmra.mxu0 %v1577
      %v1718 = vpop.f32.mrf.mxu0
      %v1719 = vadd.f32 %v1619, %v1718
      %v1720 = vpop.f32.mrf.mxu0
      %v1721 = vadd.f32 %v1619, %v1720
      %1722 = vmatmul.bf16.gmra.mxu0 %v1578
      %v1723 = vpop.f32.mrf.mxu0
      %v1724 = vadd.f32 %v1619, %v1723
      %v1725 = vpop.f32.mrf.mxu0
      %v1726 = vadd.f32 %v1619, %v1725
      %1727 = vmatmul.bf16.gmra.mxu0 %v1579
      %v1728 = vpop.f32.mrf.mxu0
      %v1729 = vadd.f32 %v1619, %v1728
      %v1730 = vpop.f32.mrf.mxu0
      %v1731 = vadd.f32 %v1619, %v1730
      %1732 = vmatmul.bf16.gmra.mxu0 %v1580
      %v1733 = vpop.f32.mrf.mxu0
      %v1734 = vadd.f32 %v1619, %v1733
      %v1735 = vpop.f32.mrf.mxu0
      %v1736 = vadd.f32 %v1619, %v1735
      %1737 = vmatmul.bf16.gmra.mxu0 %v1581
      %v1738 = vpop.f32.mrf.mxu0
      %v1739 = vadd.f32 %v1619, %v1738
      %v1740 = vpop.f32.mrf.mxu0
      %v1741 = vadd.f32 %v1619, %v1740
      %1742 = vmatmul.bf16.gmra.mxu0 %v1582
      %v1743 = vpop.f32.mrf.mxu0
      %v1744 = vadd.f32 %v1619, %v1743
      %v1745 = vpop.f32.mrf.mxu0
      %v1746 = vadd.f32 %v1619, %v1745
      %1747 = vmatmul.bf16.gmra.mxu0 %v1583
      %v1748 = vpop.f32.mrf.mxu0
      %v1749 = vadd.f32 %v1619, %v1748
      %v1750 = vpop.f32.mrf.mxu0
      %v1751 = vadd.f32 %v1619, %v1750
      %1752 = vmatmul.bf16.gmra.mxu0 %v1584
      %v1753 = vpop.f32.mrf.mxu0
      %v1754 = vadd.f32 %v1619, %v1753
      %v1755 = vpop.f32.mrf.mxu0
      %v1756 = vadd.f32 %v1619, %v1755
      %1757 = vmatmul.bf16.gmra.mxu0 %v1585
      %v1758 = vpop.f32.mrf.mxu0
      %v1759 = vadd.f32 %v1619, %v1758
      %v1760 = vpop.f32.mrf.mxu0
      %v1761 = vadd.f32 %v1619, %v1760
      %1762 = vmatmul.bf16.gmra.mxu0 %v1586
      %v1763 = vpop.f32.mrf.mxu0
      %v1764 = vadd.f32 %v1619, %v1763
      %v1765 = vpop.f32.mrf.mxu0
      %v1766 = vadd.f32 %v1619, %v1765
      %1767 = vmatmul.bf16.gmra.mxu0 %v1587
      %v1768 = vpop.f32.mrf.mxu0
      %v1769 = vadd.f32 %v1619, %v1768
      %v1770 = vpop.f32.mrf.mxu0
      %v1771 = vadd.f32 %v1619, %v1770
      %1772 = vmatmul.bf16.gmra.mxu0 %v1588
      %v1773 = vpop.f32.mrf.mxu0
      %v1774 = vadd.f32 %v1619, %v1773
      %v1775 = vpop.f32.mrf.mxu0
      %v1776 = vadd.f32 %v1619, %v1775
      %1777 = vmatmul.bf16.gmra.mxu0 %v1589
      %v1778 = vpop.f32.mrf.mxu0
      %v1779 = vadd.f32 %v1619, %v1778
      %v1780 = vpop.f32.mrf.mxu0
      %v1781 = vadd.f32 %v1619, %v1780
      %1782 = vmatmul.bf16.gmra.mxu0 %v1590
      %v1783 = vpop.f32.mrf.mxu0
      %v1784 = vadd.f32 %v1619, %v1783
      %v1785 = vpop.f32.mrf.mxu0
      %v1786 = vadd.f32 %v1619, %v1785
      %1787 = vmatmul.bf16.gmra.mxu0 %v1591
      %v1788 = vpop.f32.mrf.mxu0
      %v1789 = vadd.f32 %v1619, %v1788
      %v1790 = vpop.f32.mrf.mxu0
      %v1791 = vadd.f32 %v1619, %v1790
      %1792 = vmatmul.bf16.gmra.mxu0 %v1592
      %v1793 = vpop.f32.mrf.mxu0
      %v1794 = vadd.f32 %v1619, %v1793
      %v1795 = vpop.f32.mrf.mxu0
      %v1796 = vadd.f32 %v1619, %v1795
      %1797 = vmatmul.bf16.gmra.mxu0 %v1593
      %v1798 = vpop.f32.mrf.mxu0
      %v1799 = vadd.f32 %v1619, %v1798
      %v1800 = vpop.f32.mrf.mxu0
      %v1801 = vadd.f32 %v1619, %v1800
      %1802 = vmatmul.bf16.gmra.mxu0 %v1594
      %v1803 = vpop.f32.mrf.mxu0
      %v1804 = vadd.f32 %v1619, %v1803
      %v1805 = vpop.f32.mrf.mxu0
      %v1806 = vadd.f32 %v1619, %v1805
      %1807 = vmatmul.bf16.gmra.mxu0 %v1595
      %v1808 = vpop.f32.mrf.mxu0
      %v1809 = vadd.f32 %v1619, %v1808
      %v1810 = vpop.f32.mrf.mxu0
      %v1811 = vadd.f32 %v1619, %v1810
      %1812 = vmatmul.bf16.gmra.mxu0 %v1596
      %v1813 = vpop.f32.mrf.mxu0
      %v1814 = vadd.f32 %v1619, %v1813
      %v1815 = vpop.f32.mrf.mxu0
      %v1816 = vadd.f32 %v1619, %v1815
      %1817 = vmatmul.bf16.gmra.mxu0 %v1597
      %v1818 = vpop.f32.mrf.mxu0
      %v1819 = vadd.f32 %v1619, %v1818
      %v1820 = vpop.f32.mrf.mxu0
      %v1821 = vadd.f32 %v1619, %v1820
      %1822 = vmatmul.bf16.gmra.mxu0 %v1598
      %v1823 = vpop.f32.mrf.mxu0
      %v1824 = vadd.f32 %v1619, %v1823
      %v1825 = vpop.f32.mrf.mxu0
      %v1826 = vadd.f32 %v1619, %v1825
      %1827 = vmatmul.bf16.gmra.mxu0 %v1599
      %v1828 = vpop.f32.mrf.mxu0
      %v1829 = vadd.f32 %v1619, %v1828
      %v1830 = vpop.f32.mrf.mxu0
      %v1831 = vadd.f32 %v1619, %v1830
      %1832 = vmatmul.bf16.gmra.mxu0 %v1600
      %v1833 = vpop.f32.mrf.mxu0
      %v1834 = vadd.f32 %v1619, %v1833
      %v1835 = vpop.f32.mrf.mxu0
      %v1836 = vadd.f32 %v1619, %v1835
      %1837 = vdwg.mxu0
      %vm1838 = vcmask 64512
      %1839 = vst.msk [vmem:[%s334] sm:$0xff] %vm1838, %v1679
      %1840 = vst.msk [vmem:[%s334 + $0x8] sm:$0xff] %vm1838, %v1681
      %1841 = vst.msk [vmem:[%s334 + $0x10] sm:$0xff] %vm1838, %v1684
      %1842 = vst.msk [vmem:[%s334 + $0x18] sm:$0xff] %vm1838, %v1686
      %1843 = vst.msk [vmem:[%s334 + $0x20] sm:$0xff] %vm1838, %v1689
      %1844 = vst.msk [vmem:[%s334 + $0x28] sm:$0xff] %vm1838, %v1691
      %1845 = vst.msk [vmem:[%s334 + $0x30] sm:$0xff] %vm1838, %v1694
      %1846 = vst.msk [vmem:[%s334 + $0x38] sm:$0xff] %vm1838, %v1696
      %1847 = vst.msk [vmem:[%s334 + $0x40] sm:$0xff] %vm1838, %v1699
      %1848 = vst.msk [vmem:[%s334 + $0x48] sm:$0xff] %vm1838, %v1701
      %1849 = vst.msk [vmem:[%s334 + $0x50] sm:$0xff] %vm1838, %v1704
      %1850 = vst.msk [vmem:[%s334 + $0x58] sm:$0xff] %vm1838, %v1706
      %1851 = vst.msk [vmem:[%s334 + $0x60] sm:$0xff] %vm1838, %v1709
      %1852 = vst.msk [vmem:[%s334 + $0x68] sm:$0xff] %vm1838, %v1711
      %1853 = vst.msk [vmem:[%s334 + $0x70] sm:$0xff] %vm1838, %v1714
      %1854 = vst.msk [vmem:[%s334 + $0x78] sm:$0xff] %vm1838, %v1716
      %1855 = vst.msk [vmem:[%s334 + $0x80] sm:$0xff] %vm1838, %v1719
      %1856 = vst.msk [vmem:[%s334 + $0x88] sm:$0xff] %vm1838, %v1721
      %1857 = vst.msk [vmem:[%s334 + $0x90] sm:$0xff] %vm1838, %v1724
      %1858 = vst.msk [vmem:[%s334 + $0x98] sm:$0xff] %vm1838, %v1726
      %1859 = vst.msk [vmem:[%s334 + $0xa0] sm:$0xff] %vm1838, %v1729
      %1860 = vst.msk [vmem:[%s334 + $0xa8] sm:$0xff] %vm1838, %v1731
      %1861 = vst.msk [vmem:[%s334 + $0xb0] sm:$0xff] %vm1838, %v1734
      %1862 = vst.msk [vmem:[%s334 + $0xb8] sm:$0xff] %vm1838, %v1736
      %1863 = vst.msk [vmem:[%s334 + $0xc0] sm:$0xff] %vm1838, %v1739
      %1864 = vst.msk [vmem:[%s334 + $0xc8] sm:$0xff] %vm1838, %v1741
      %1865 = vst.msk [vmem:[%s334 + $0xd0] sm:$0xff] %vm1838, %v1744
      %1866 = vst.msk [vmem:[%s334 + $0xd8] sm:$0xff] %vm1838, %v1746
      %1867 = vst.msk [vmem:[%s334 + $0xe0] sm:$0xff] %vm1838, %v1749
      %1868 = vst.msk [vmem:[%s334 + $0xe8] sm:$0xff] %vm1838, %v1751
      %1869 = vst.msk [vmem:[%s334 + $0xf0] sm:$0xff] %vm1838, %v1754
      %1870 = vst.msk [vmem:[%s334 + $0xf8] sm:$0xff] %vm1838, %v1756
      %1871 = vst.msk [vmem:[%s334 + $0x100] sm:$0xff] %vm1838, %v1759
      %1872 = vst.msk [vmem:[%s334 + $0x108] sm:$0xff] %vm1838, %v1761
      %1873 = vst.msk [vmem:[%s334 + $0x110] sm:$0xff] %vm1838, %v1764
      %1874 = vst.msk [vmem:[%s334 + $0x118] sm:$0xff] %vm1838, %v1766
      %1875 = vst.msk [vmem:[%s334 + $0x120] sm:$0xff] %vm1838, %v1769
      %1876 = vst.msk [vmem:[%s334 + $0x128] sm:$0xff] %vm1838, %v1771
      %1877 = vst.msk [vmem:[%s334 + $0x130] sm:$0xff] %vm1838, %v1774
      %1878 = vst.msk [vmem:[%s334 + $0x138] sm:$0xff] %vm1838, %v1776
      %1879 = vst.msk [vmem:[%s334 + $0x140] sm:$0xff] %vm1838, %v1779
      %1880 = vst.msk [vmem:[%s334 + $0x148] sm:$0xff] %vm1838, %v1781
      %1881 = vst.msk [vmem:[%s334 + $0x150] sm:$0xff] %vm1838, %v1784
      %1882 = vst.msk [vmem:[%s334 + $0x158] sm:$0xff] %vm1838, %v1786
      %1883 = vst.msk [vmem:[%s334 + $0x160] sm:$0xff] %vm1838, %v1789
      %1884 = vst.msk [vmem:[%s334 + $0x168] sm:$0xff] %vm1838, %v1791
      %1885 = vst.msk [vmem:[%s334 + $0x170] sm:$0xff] %vm1838, %v1794
      %1886 = vst.msk [vmem:[%s334 + $0x178] sm:$0xff] %vm1838, %v1796
      %1887 = vst.msk [vmem:[%s334 + $0x180] sm:$0xff] %vm1838, %v1799
      %1888 = vst.msk [vmem:[%s334 + $0x188] sm:$0xff] %vm1838, %v1801
      %1889 = vst.msk [vmem:[%s334 + $0x190] sm:$0xff] %vm1838, %v1804
      %1890 = vst.msk [vmem:[%s334 + $0x198] sm:$0xff] %vm1838, %v1806
      %1891 = vst.msk [vmem:[%s334 + $0x1a0] sm:$0xff] %vm1838, %v1809
      %1892 = vst.msk [vmem:[%s334 + $0x1a8] sm:$0xff] %vm1838, %v1811
      %1893 = vst.msk [vmem:[%s334 + $0x1b0] sm:$0xff] %vm1838, %v1814
      %1894 = vst.msk [vmem:[%s334 + $0x1b8] sm:$0xff] %vm1838, %v1816
      %1895 = vst.msk [vmem:[%s334 + $0x1c0] sm:$0xff] %vm1838, %v1819
      %1896 = vst.msk [vmem:[%s334 + $0x1c8] sm:$0xff] %vm1838, %v1821
      %1897 = vst.msk [vmem:[%s334 + $0x1d0] sm:$0xff] %vm1838, %v1824
      %1898 = vst.msk [vmem:[%s334 + $0x1d8] sm:$0xff] %vm1838, %v1826
      %1899 = vst.msk [vmem:[%s334 + $0x1e0] sm:$0xff] %vm1838, %v1829
      %1900 = vst.msk [vmem:[%s334 + $0x1e8] sm:$0xff] %vm1838, %v1831
      %1901 = vst.msk [vmem:[%s334 + $0x1f0] sm:$0xff] %vm1838, %v1834
      %1902 = vst.msk [vmem:[%s334 + $0x1f8] sm:$0xff] %vm1838, %v1836
      %s1903 = smul.u32 64, %s20
      %p1904 = scmp.lt.s32.totalorder %s1903, 127
      %s1905 = scalar_select %p1904, %s1903, 127
      %s1906 = smul.addr %s1905, 8
      %s1907 = scalar_lea.vmem %s9, %s1906
      // Predicated region
      $region57: #{qnet_forward.1} parent=55 // pred_check
        %p1908 = pneg %p232
      $region58: #{qnet_forward.1} parent=55 // pred_check_branch
        %1910 = sbr.rel (%p1908) target = $region60
      $region59: #{qnet_forward.1} parent=55 // pred_region
        %s1911 = smul.u32 64, %s20
      $region60: #{qnet_forward.1} parent=55 // pred_fallthru
        _
    $region56: #{qnet_forward.1} parent=5 // pred_fallthru
      _
    %p1912 = scmp.le.s32.totalorder 2, %s15
    // Predicated region
    $region61: #{qnet_forward.1} parent=5 // pred_check
      %p1913 = pneg %p1912
    $region62: #{qnet_forward.1} parent=5 // pred_check_branch
      %1915 = sbr.rel (%p1913) target = $region64
    $region63: #{qnet_forward.1} parent=5 // pred_region
      %s1916 = ssub.s32 %s15, 2
      // Predicated region
      $region65: #{qnet_forward.1} parent=63 // pred_check
        %p1917 = pneg %p238
      $region66: #{qnet_forward.1} parent=63 // pred_check_branch
        %1919 = sbr.rel (%p1917) target = $region68
      $region67: #{qnet_forward.1} parent=63 // pred_region
        %s1920 = smul.u32 64, %s21
        %p1921 = scmp.lt.s32.totalorder %s1920, 127
        %s1922 = scalar_select %p1921, %s1920, 127
        %s1923 = smul.addr %s1922, 8
        %s1924 = scalar_lea.vmem %s9, %s1923
      $region68: #{qnet_forward.1} parent=63 // pred_fallthru
        _
    $region64: #{qnet_forward.1} parent=5 // pred_fallthru
      _
  $region6: #{qnet_forward.1} parent=0 // loop_footer
    %s19 = sadd.s32 1, %s15
  $region7: #{qnet_forward.1} parent=0 // loop_footer_branch
    %14 = sbr.rel target = $region3
  $region8: #{qnet_forward.1} parent=0 // loop_exit
    _

</llo_original>
